<compile_context>
chip_gen: v5e
topology: v5e:2x2
jax: 0.10.0
libtpu: 0.0.40
codegen_flags: <defaults>
</compile_context>

<pallas_src>
import functools

import jax
import jax.numpy as jnp
from jax.experimental import pallas as pl
from jax.experimental.pallas import tpu as pltpu


def _round_up(v, m):
    return ((v + m - 1) // m) * m


def _patch_ssim_kernel(w_ref, x_ref, y_ref, o_ref, stats_ref, *, c1, c2):
    """One grid step: `rows` (patch, channel) rows, each a flattened P*P patch.

    w_ref:     (P*P, PV2p) f32   kron(G, G) valid-window Gaussian weights (resident)
    x_ref:     (rows, P*P)       flattened patches of image x
    y_ref:     (rows, P*P)       flattened patches of image y
    o_ref:     (rows, 1)  f32    per-row sum of the SSIM map over window positions
    stats_ref: (5*rows, P*P) f32 persistent VMEM staging for the 5 statistics maps
    """
    rows = x_ref.shape[0]

    x = x_ref[...].astype(jnp.float32)
    y = y_ref[...].astype(jnp.float32)

    # Stage x, y, x^2, y^2, x*y contiguously so they share ONE MXU matmul
    # (no per-step jnp.concatenate allocation/copy).
    stats_ref[pl.ds(0 * rows, rows), :] = x
    stats_ref[pl.ds(1 * rows, rows), :] = y
    stats_ref[pl.ds(2 * rows, rows), :] = x * x
    stats_ref[pl.ds(3 * rows, rows), :] = y * y
    stats_ref[pl.ds(4 * rows, rows), :] = x * y

    blur = jnp.dot(stats_ref[...], w_ref[...], preferred_element_type=jnp.float32)

    mu_x = blur[0 * rows:1 * rows]
    mu_y = blur[1 * rows:2 * rows]
    e_x2 = blur[2 * rows:3 * rows]
    e_y2 = blur[3 * rows:4 * rows]
    e_xy = blur[4 * rows:5 * rows]

    mu_x2 = mu_x * mu_x
    mu_y2 = mu_y * mu_y
    mu_xy = mu_x * mu_y
    s_x = e_x2 - mu_x2
    s_y = e_y2 - mu_y2
    s_xy = e_xy - mu_xy

    num = (2.0 * mu_xy + c1) * (2.0 * s_xy + c2)
    den = (mu_x2 + mu_y2 + c1) * (s_x + s_y + c2)
    ssim_map = num / den                                        # (rows, PV2p)

    # Per-row sum over window positions (padded weight columns contribute
    # exactly 1.0 each; removed in the wrapper). Per-patch combine + norm
    # happen on a tiny vector in the wrapper.
    o_ref[...] = jnp.sum(ssim_map, axis=-1, keepdims=True).astype(o_ref.dtype)


def patch_ssim_loss(x, y, *, patch_size=32, win_size=11, win_sigma=1.5,
                    k1=0.01, k2=0.03, data_range=1.0):
    """Pallas TPU forward of PatchSSIMLoss: || 1 - SSIM(patch_p) ||_2."""
    assert x.shape == y.shape and x.ndim == 4, "expected NCHW inputs"
    B, C, H, W = x.shape
    P = patch_size
    if H < P or W < P:
        raise ValueError("image smaller than patch_size: no complete patches")
    if win_size > P:
        raise ValueError("win_size must be <= patch_size")

    nH, nW = H // P, W // P
    NP = nH * nW
    Bc = B * C
    PP = P * P
    Pv = P - win_size + 1
    PV2 = Pv * Pv
    PV2p = _round_up(PV2, 128)          # lane-dense / unmasked MXU N dim

    # --- Gaussian valid-window weights, folded into one dense matrix.
    d = (jnp.arange(win_size, dtype=jnp.float32) - (win_size - 1) / 2.0) / win_sigma
    g = jnp.exp(-0.5 * d * d)
    g = g / jnp.sum(g)
    q = jnp.arange(P)[:, None]
    wv = jnp.arange(Pv)[None, :]
    off = q - wv
    band = jnp.where((off >= 0) & (off < win_size),
                     g[jnp.clip(off, 0, win_size - 1)], 0.0).astype(jnp.float32)  # (P, Pv)
    w2d = jnp.kron(band, band)                                   # (P*P, Pv*Pv)
    w2d = jnp.pad(w2d, ((0, 0), (0, PV2p - PV2)))                # (P*P, PV2p)
    # Zero-weight padded columns make the padded windows evaluate to exactly
    # SSIM = 1.0 -> subtracted exactly in the combine below.

    c1 = float((k1 * data_range) ** 2)
    c2 = float((k2 * data_range) ** 2)

    # --- Flat, lane-dense patch layout: row = (bc, patch), last dim = P*P.
    x = x[:, :, :nH * P, :nW * P]
    y = y[:, :, :nH * P, :nW * P]
    xp = jnp.transpose(x.reshape(Bc, nH, P, nW, P), (0, 1, 3, 2, 4)).reshape(Bc * NP, PP)
    yp = jnp.transpose(y.reshape(Bc, nH, P, nW, P), (0, 1, 3, 2, 4)).reshape(Bc * NP, PP)

    # --- Row tiling: ~2 MiB per f32 input block, MXU-aligned M, >=2 grid steps
    # when there is enough work (v7x has 2 TensorCores).
    ROW_ALIGN = 8
    TARGET_ROWS = 512                    # 512 rows * 1024 * 4 B = 2 MiB / block; 5n = 2560
    rows = Bc * NP
    if rows >= 2 * TARGET_ROWS:
        tile_rows = TARGET_ROWS
    elif rows > 2 * ROW_ALIGN:
        tile_rows = _round_up((rows + 1) // 2, ROW_ALIGN)
        if tile_rows >= 256:
            tile_rows = _round_up(tile_rows, 256)
    else:
        tile_rows = _round_up(rows, ROW_ALIGN)

    num_tiles = pl.cdiv(rows, tile_rows)
    rows_pad = num_tiles * tile_rows
    if rows_pad != rows:
        pad = rows_pad - rows
        # Zero rows give SSIM == 1 everywhere (no NaNs); they are sliced off
        # before the per-patch combine.
        xp = jnp.pad(xp, ((0, pad), (0, 0)))
        yp = jnp.pad(yp, ((0, pad), (0, 0)))

    kernel = functools.partial(_patch_ssim_kernel, c1=c1, c2=c2)
    out = pl.pallas_call(
        kernel,
        out_shape=jax.ShapeDtypeStruct((rows_pad, 1), jnp.float32),
        grid_spec=pltpu.PrefetchScalarGridSpec(
            num_scalar_prefetch=0,
            grid=(num_tiles,),
            in_specs=[
                pl.BlockSpec((PP, PV2p), lambda i: (0, 0)),        # weights, resident
                pl.BlockSpec((tile_rows, PP), lambda i: (i, 0)),
                pl.BlockSpec((tile_rows, PP), lambda i: (i, 0)),
            ],
            out_specs=pl.BlockSpec((tile_rows, 1), lambda i: (i, 0)),
            scratch_shapes=[pltpu.VMEM((5 * tile_rows, PP), jnp.float32)],
        ),
        compiler_params=pltpu.CompilerParams(
            dimension_semantics=("parallel",),
            vmem_limit_bytes=64 * 1024 * 1024,
        ),
    )(w2d, xp, yp)

    # --- Tiny per-patch combine + final norm in plain JAX.
    row_sums = out[:rows, 0] - float(PV2p - PV2)      # remove padded windows (each == 1.0)
    per_patch = jnp.sum(row_sums.reshape(Bc, NP), axis=0) / float(Bc * PV2)
    losses = 1.0 - per_patch
    return jnp.sqrt(jnp.sum(losses * losses))


def _reference_patch_ssim_loss(x, y, *, patch_size=32, win_size=11, win_sigma=1.5,
                               k1=0.01, k2=0.03, data_range=1.0):
    """Pure-JAX reference (explicit valid conv per patch), same math as the module."""
    B, C, H, W = x.shape
    P = patch_size
    d = (jnp.arange(win_size, dtype=jnp.float32) - (win_size - 1) / 2.0) / win_sigma
    g = jnp.exp(-0.5 * d * d)
    g = g / jnp.sum(g)
    k2d = jnp.outer(g, g)[None, None, :, :].astype(jnp.float32)  # OIHW
    c1 = (k1 * data_range) ** 2
    c2 = (k2 * data_range) ** 2

    def blur(z):
        return jax.lax.conv_general_dilated(
            z, k2d, window_strides=(1, 1), padding="VALID",
            dimension_numbers=("NCHW", "OIHW", "NCHW"),
            precision=jax.lax.Precision.HIGHEST)

    losses = []
    for i in range(0, H, P):
        for j in range(0, W, P):
            if i + P > H or j + P > W:
                continue
            px = x[:, :, i:i + P, j:j + P].reshape(B * C, 1, P, P).astype(jnp.float32)
            py = y[:, :, i:i + P, j:j + P].reshape(B * C, 1, P, P).astype(jnp.float32)
            mx, my = blur(px), blur(py)
            sx = blur(px * px) - mx * mx
            sy = blur(py * py) - my * my
            sxy = blur(px * py) - mx * my
            m = ((2 * mx * my + c1) * (2 * sxy + c2)) / ((mx * mx + my * my + c1) * (sx + sy + c2))
            losses.append(1.0 - jnp.mean(m))
    losses = jnp.stack(losses)
    return jnp.sqrt(jnp.sum(losses * losses))


if __name__ == "__main__":
    key = jax.random.PRNGKey(0)
    kx, ky = jax.random.split(key)
    B, C, H, W = 2, 1, 64, 64           # (batch, 1, H, W), values in [0, 1]
    x = jax.random.uniform(kx, (B, C, H, W), dtype=jnp.float32)
    y = jax.random.uniform(ky, (B, C, H, W), dtype=jnp.float32)

    loss = patch_ssim_loss(x, y, patch_size=32)
    jax.block_until_ready(loss)

    ref = _reference_patch_ssim_loss(x, y, patch_size=32)
    jax.block_until_ready(ref)
    assert jnp.allclose(loss, ref, rtol=1e-3, atol=1e-3), (loss, ref)

    print("KERNEL_OK")
</pallas_src>

<mosaic_0001>
module attributes {stable_mosaic.version = 11 : i64} {
  func.func @_patch_ssim_kernel(%arg0: i32, %arg1: memref<1024x512xf32, #tpu.memory_space<vmem>>, %arg2: memref<8x1024xf32, #tpu.memory_space<vmem>>, %arg3: memref<8x1024xf32, #tpu.memory_space<vmem>>, %arg4: memref<8x1xf32, #tpu.memory_space<vmem>>, %arg5: memref<40x1024xf32, #tpu.memory_space<vmem>>) attributes {dimension_semantics = [#tpu.dimension_semantics<parallel>], iteration_bounds = array<i64: 1>, scalar_prefetch = 0 : i64, scratch_operands = 1 : i64, tpu.core_type = #tpu.core_type<tc>, window_params = [{pipeline_mode = #tpu.pipeline_mode<synchronous>, transform_indices = @transform_0, window_bounds = array<i64: 1024, 512>}, {transform_indices = @transform_1, window_bounds = array<i64: 8, 1024>}, {transform_indices = @transform_2, window_bounds = array<i64: 8, 1024>}, {transform_indices = @transform_3, window_bounds = array<i64: 8, 1>}]} {
    %c0 = arith.constant 0 : index
    %c0_0 = arith.constant 0 : index
    %0 = vector.load %arg2[%c0, %c0_0] : memref<8x1024xf32, #tpu.memory_space<vmem>>, vector<8x1024xf32>
    %c0_1 = arith.constant 0 : index
    %c0_2 = arith.constant 0 : index
    %1 = vector.load %arg3[%c0_1, %c0_2] : memref<8x1024xf32, #tpu.memory_space<vmem>>, vector<8x1024xf32>
    %c0_3 = arith.constant 0 : index
    %c0_4 = arith.constant 0 : index
    %2 = vector.load %arg5[%c0_3, %c0_4] : memref<40x1024xf32, #tpu.memory_space<vmem>>, vector<8x1024xf32>
    tpu.vector_store %arg5[%c0_3, %c0_4], %0 {strides = array<i32>} : memref<40x1024xf32, #tpu.memory_space<vmem>>, vector<8x1024xf32>,
    %c8 = arith.constant 8 : index
    %c0_5 = arith.constant 0 : index
    %3 = vector.load %arg5[%c8, %c0_5] : memref<40x1024xf32, #tpu.memory_space<vmem>>, vector<8x1024xf32>
    tpu.vector_store %arg5[%c8, %c0_5], %1 {strides = array<i32>} : memref<40x1024xf32, #tpu.memory_space<vmem>>, vector<8x1024xf32>,
    %4 = arith.mulf %0, %0 : vector<8x1024xf32>
    %c16 = arith.constant 16 : index
    %c0_6 = arith.constant 0 : index
    %5 = vector.load %arg5[%c16, %c0_6] : memref<40x1024xf32, #tpu.memory_space<vmem>>, vector<8x1024xf32>
    tpu.vector_store %arg5[%c16, %c0_6], %4 {strides = array<i32>} : memref<40x1024xf32, #tpu.memory_space<vmem>>, vector<8x1024xf32>,
    %6 = arith.mulf %1, %1 : vector<8x1024xf32>
    %c24 = arith.constant 24 : index
    %c0_7 = arith.constant 0 : index
    %7 = vector.load %arg5[%c24, %c0_7] : memref<40x1024xf32, #tpu.memory_space<vmem>>, vector<8x1024xf32>
    tpu.vector_store %arg5[%c24, %c0_7], %6 {strides = array<i32>} : memref<40x1024xf32, #tpu.memory_space<vmem>>, vector<8x1024xf32>,
    %8 = arith.mulf %0, %1 : vector<8x1024xf32>
    %c32 = arith.constant 32 : index
    %c0_8 = arith.constant 0 : index
    %9 = vector.load %arg5[%c32, %c0_8] : memref<40x1024xf32, #tpu.memory_space<vmem>>, vector<8x1024xf32>
    tpu.vector_store %arg5[%c32, %c0_8], %8 {strides = array<i32>} : memref<40x1024xf32, #tpu.memory_space<vmem>>, vector<8x1024xf32>,
    %c0_9 = arith.constant 0 : index
    %c0_10 = arith.constant 0 : index
    %10 = vector.load %arg5[%c0_9, %c0_10] : memref<40x1024xf32, #tpu.memory_space<vmem>>, vector<40x1024xf32>
    %c0_11 = arith.constant 0 : index
    %c0_12 = arith.constant 0 : index
    %11 = vector.load %arg1[%c0_11, %c0_12] : memref<1024x512xf32, #tpu.memory_space<vmem>>, vector<1024x512xf32>
    %cst = arith.constant dense<0.000000e+00> : vector<40x512xf32>
    %12 = tpu.matmul %10, %11, %cst {dimension_numbers = #tpu.dot_dimension_numbers<[1], [0], [0], [1], [0, 0, 1, 1], [], []>} : vector<40x1024xf32>, vector<1024x512xf32>, vector<40x512xf32> -> vector<40x512xf32>
    %13 = vector.extract_strided_slice %12 {offsets = [0, 0], sizes = [8, 512], strides = [1, 1]} : vector<40x512xf32> to vector<8x512xf32>
    %14 = vector.extract_strided_slice %12 {offsets = [8, 0], sizes = [8, 512], strides = [1, 1]} : vector<40x512xf32> to vector<8x512xf32>
    %15 = vector.extract_strided_slice %12 {offsets = [16, 0], sizes = [8, 512], strides = [1, 1]} : vector<40x512xf32> to vector<8x512xf32>
    %16 = vector.extract_strided_slice %12 {offsets = [24, 0], sizes = [8, 512], strides = [1, 1]} : vector<40x512xf32> to vector<8x512xf32>
    %17 = vector.extract_strided_slice %12 {offsets = [32, 0], sizes = [8, 512], strides = [1, 1]} : vector<40x512xf32> to vector<8x512xf32>
    %18 = arith.mulf %13, %13 : vector<8x512xf32>
    %19 = arith.mulf %14, %14 : vector<8x512xf32>
    %20 = arith.mulf %13, %14 : vector<8x512xf32>
    %21 = arith.subf %15, %18 : vector<8x512xf32>
    %22 = arith.subf %16, %19 : vector<8x512xf32>
    %23 = arith.subf %17, %20 : vector<8x512xf32>
    %cst_13 = arith.constant 2.000000e+00 : f32
    %24 = vector.broadcast %cst_13 : f32 to vector<8x512xf32>
    %25 = arith.mulf %24, %20 : vector<8x512xf32>
    %cst_14 = arith.constant 9.99999974E-5 : f32
    %26 = vector.broadcast %cst_14 : f32 to vector<8x512xf32>
    %27 = arith.addf %25, %26 : vector<8x512xf32>
    %cst_15 = arith.constant 2.000000e+00 : f32
    %28 = vector.broadcast %cst_15 : f32 to vector<8x512xf32>
    %29 = arith.mulf %28, %23 : vector<8x512xf32>
    %cst_16 = arith.constant 8.99999984E-4 : f32
    %30 = vector.broadcast %cst_16 : f32 to vector<8x512xf32>
    %31 = arith.addf %29, %30 : vector<8x512xf32>
    %32 = arith.mulf %27, %31 : vector<8x512xf32>
    %33 = arith.addf %18, %19 : vector<8x512xf32>
    %cst_17 = arith.constant 9.99999974E-5 : f32
    %34 = vector.broadcast %cst_17 : f32 to vector<8x512xf32>
    %35 = arith.addf %33, %34 : vector<8x512xf32>
    %36 = arith.addf %21, %22 : vector<8x512xf32>
    %cst_18 = arith.constant 8.99999984E-4 : f32
    %37 = vector.broadcast %cst_18 : f32 to vector<8x512xf32>
    %38 = arith.addf %36, %37 : vector<8x512xf32>
    %39 = arith.mulf %35, %38 : vector<8x512xf32>
    %40 = arith.divf %32, %39 : vector<8x512xf32>
    %cst_19 = arith.constant dense<0.000000e+00> : vector<8xf32>
    %41 = vector.multi_reduction <add>, %40, %cst_19 [1] : vector<8x512xf32> to vector<8xf32>
    %42 = vector.shape_cast %41 : vector<8xf32> to vector<8x1xf32>
    %c0_20 = arith.constant 0 : index
    %c0_21 = arith.constant 0 : index
    %43 = vector.load %arg4[%c0_20, %c0_21] : memref<8x1xf32, #tpu.memory_space<vmem>>, vector<8x1xf32>
    tpu.vector_store %arg4[%c0_20, %c0_21], %42 {strides = array<i32>} : memref<8x1xf32, #tpu.memory_space<vmem>>, vector<8x1xf32>,
    return
  }
  func.func @transform_0(%arg0: i32) -> (i32, i32) {
    %c0_i32 = arith.constant 0 : i32
    %c0_i32_0 = arith.constant 0 : i32
    %c0_i32_1 = arith.constant 0 : i32
    return %c0_i32, %c0_i32_0 : i32, i32
  }
  func.func @transform_1(%arg0: i32) -> (i32, i32) {
    %c0_i32 = arith.constant 0 : i32
    %c0_i32_0 = arith.constant 0 : i32
    return %arg0, %c0_i32 : i32, i32
  }
  func.func @transform_2(%arg0: i32) -> (i32, i32) {
    %c0_i32 = arith.constant 0 : i32
    %c0_i32_0 = arith.constant 0 : i32
    return %arg0, %c0_i32 : i32, i32
  }
  func.func @transform_3(%arg0: i32) -> (i32, i32) {
    %c0_i32 = arith.constant 0 : i32
    %c0_i32_0 = arith.constant 0 : i32
    return %arg0, %c0_i32 : i32, i32
  }
}

</mosaic_0001>

<llo_original>
// kernel: tpu_custom_call.1
$region0: #{tpu_custom_call.1}
  #allocation0 [shape = 'u32[]', space=smem, size = 0x4, offset = 0x4, fixed_abs, tag = 'smem constant byte address 0x4 - core index']
  #allocation1 [shape = 'u32[72,128]{1,0:T(1,128)}', space=vmem, size = 0x9000, scoped, tag = 'internal scratch']
  #allocation2 [shape = 'f32[40,1024]{1,0:T(8,128)}', space=vmem, size = 0x28000, scoped, tag = 'scratch operand']
  %s0 = inlined_call_operand.hbm [shape: f32[1024,512], index: 0, kind: input, shape index: {}]
  %s1 = inlined_call_operand.hbm [shape: f32[8,1024], index: 1, kind: input, shape index: {}]
  %s2 = inlined_call_operand.hbm [shape: f32[8,1024], index: 2, kind: input, shape index: {}]
  %s3 = inlined_call_operand.vmem [shape: f32[8,1], index: 3, kind: output, shape index: {}]
  %s4 = sld [smem:[#allocation0]]
  $region34: #{tpu_custom_call.1} parent=0
    _
  %s6 = ssub.s32 1, %s4
  %s7 = scalar_select 0, %s6, %s4
  $region1: #{tpu_custom_call.1} parent=0
    #allocation3 [shape = 'u8[2097152]{0}', space=vmem, size = 0x200000, scoped, tag = 'input window, operand 0, single buffered']
    #allocation4 [shape = 's32[1]{0}', space=sflag, size = 0x4, scoped, tag = 'scoped memory for tpu_custom_call.1']
    #allocation5 [shape = 'u8[32768]{0}', space=vmem, size = 0x8000, scoped, tag = 'input window, operand 1, single buffered']
    #allocation6 [shape = 's32[1]{0}', space=sflag, size = 0x4, scoped, tag = 'scoped memory for tpu_custom_call.1']
    #allocation7 [shape = 'u8[32768]{0}', space=vmem, size = 0x8000, scoped, tag = 'input window, operand 2, single buffered']
    %8 = vsyncpa [#allocation4], 0
    %9 = vsyncpa [#allocation6], 0
    // Predicated region
    $region2: #{tpu_custom_call.1} parent=1 // pred_check
      _
    $region3: #{tpu_custom_call.1} parent=1 // pred_check_branch
      %11 = sbr.rel (0) target = $region5
    $region4: #{tpu_custom_call.1} parent=1 // pred_region
      %13 = vsyncadd [#allocation4], 0
      %s14 = sshll.u32 %s0, 4
      %s15 = int_to_ptr.hbm [resolvable:$true] %s14
      %s16 = sshll.u32 [#allocation3], 4
      %s17 = int_to_ptr.vmem [resolvable:$true] %s16
      %22 = dma.hbm_to_vmem [thread:$0]  %s15, 65536, %s17, [#allocation4], 512, 512, 32
    $region5: #{tpu_custom_call.1} parent=1 // pred_fallthru
      _
    // Predicated region
    $region6: #{tpu_custom_call.1} parent=1 // pred_check
      _
    $region7: #{tpu_custom_call.1} parent=1 // pred_check_branch
      %24 = sbr.rel (0) target = $region9
    $region8: #{tpu_custom_call.1} parent=1 // pred_region
      %26 = vsyncadd [#allocation6], 0
      %s28 = sshll.u32 %s1, 4
      %s29 = int_to_ptr.hbm [resolvable:$true] %s28
      %s30 = sshll.u32 [#allocation5], 4
      %s31 = int_to_ptr.vmem [resolvable:$true] %s30
      %33 = dma.hbm_to_vmem [thread:$0]  %s29, 1024, %s31, [#allocation6]
    $region9: #{tpu_custom_call.1} parent=1 // pred_fallthru
      _
    // Predicated region
    $region10: #{tpu_custom_call.1} parent=1 // pred_check
      _
    $region11: #{tpu_custom_call.1} parent=1 // pred_check_branch
      %35 = sbr.rel (0) target = $region13
    $region12: #{tpu_custom_call.1} parent=1 // pred_region
      %37 = vsyncadd [#allocation6], 0
      %s39 = sshll.u32 %s2, 4
      %s40 = int_to_ptr.hbm [resolvable:$true] %s39
      %s41 = sshll.u32 [#allocation7], 4
      %s42 = int_to_ptr.vmem [resolvable:$true] %s41
      %44 = dma.hbm_to_vmem [thread:$0]  %s40, 1024, %s42, [#allocation6]
    $region13: #{tpu_custom_call.1} parent=1 // pred_fallthru
      _
    // Predicated region
    $region14: #{tpu_custom_call.1} parent=1 // pred_check
      _
    $region15: #{tpu_custom_call.1} parent=1 // pred_check_branch
      %46 = sbr.rel (0) target = $region17
    $region16: #{tpu_custom_call.1} parent=1 // pred_region
      %48 = dma.done [#allocation4], 65536
    $region17: #{tpu_custom_call.1} parent=1 // pred_fallthru
      _
    // Predicated region
    $region18: #{tpu_custom_call.1} parent=1 // pred_check
      _
    $region19: #{tpu_custom_call.1} parent=1 // pred_check_branch
      %50 = sbr.rel (0) target = $region21
    $region20: #{tpu_custom_call.1} parent=1 // pred_region
      %52 = dma.done [#allocation6], 1024
    $region21: #{tpu_custom_call.1} parent=1 // pred_fallthru
      _
    // Predicated region
    $region22: #{tpu_custom_call.1} parent=1 // pred_check
      _
    $region23: #{tpu_custom_call.1} parent=1 // pred_check_branch
      %54 = sbr.rel (0) target = $region25
    $region24: #{tpu_custom_call.1} parent=1 // pred_region
      %56 = dma.done [#allocation6], 1024
    $region25: #{tpu_custom_call.1} parent=1 // pred_fallthru
      _
    %v57 = vld [vmem:[#allocation5] sm:$0xff]
    %v58 = vld [vmem:[#allocation5 + $0x8] sm:$0xff]
    %v59 = vld [vmem:[#allocation5 + $0x10] sm:$0xff]
    %v60 = vld [vmem:[#allocation5 + $0x18] sm:$0xff]
    %v61 = vld [vmem:[#allocation5 + $0x20] sm:$0xff]
    %v62 = vld [vmem:[#allocation5 + $0x28] sm:$0xff]
    %v63 = vld [vmem:[#allocation5 + $0x30] sm:$0xff]
    %v64 = vld [vmem:[#allocation5 + $0x38] sm:$0xff]
    %v65 = vld [vmem:[#allocation7] sm:$0xff]
    %v66 = vld [vmem:[#allocation7 + $0x8] sm:$0xff]
    %v67 = vld [vmem:[#allocation7 + $0x10] sm:$0xff]
    %v68 = vld [vmem:[#allocation7 + $0x18] sm:$0xff]
    %v69 = vld [vmem:[#allocation7 + $0x20] sm:$0xff]
    %v70 = vld [vmem:[#allocation7 + $0x28] sm:$0xff]
    %v71 = vld [vmem:[#allocation7 + $0x30] sm:$0xff]
    %v72 = vld [vmem:[#allocation7 + $0x38] sm:$0xff]
    %73 = vst [vmem:[#allocation2] sm:$0xff] %v57
    %74 = vst [vmem:[#allocation2 + $0x8] sm:$0xff] %v58
    %75 = vst [vmem:[#allocation2 + $0x10] sm:$0xff] %v59
    %76 = vst [vmem:[#allocation2 + $0x18] sm:$0xff] %v60
    %77 = vst [vmem:[#allocation2 + $0x20] sm:$0xff] %v61
    %78 = vst [vmem:[#allocation2 + $0x28] sm:$0xff] %v62
    %79 = vst [vmem:[#allocation2 + $0x30] sm:$0xff] %v63
    %80 = vst [vmem:[#allocation2 + $0x38] sm:$0xff] %v64
    %81 = vst [vmem:[#allocation2 + $0x40] sm:$0xff] %v65
    %82 = vst [vmem:[#allocation2 + $0x48] sm:$0xff] %v66
    %83 = vst [vmem:[#allocation2 + $0x50] sm:$0xff] %v67
    %84 = vst [vmem:[#allocation2 + $0x58] sm:$0xff] %v68
    %85 = vst [vmem:[#allocation2 + $0x60] sm:$0xff] %v69
    %86 = vst [vmem:[#allocation2 + $0x68] sm:$0xff] %v70
    %87 = vst [vmem:[#allocation2 + $0x70] sm:$0xff] %v71
    %88 = vst [vmem:[#allocation2 + $0x78] sm:$0xff] %v72
    %v89 = vmul.f32 %v57, %v57
    %v90 = vmul.f32 %v58, %v58
    %v91 = vmul.f32 %v59, %v59
    %v92 = vmul.f32 %v60, %v60
    %v93 = vmul.f32 %v61, %v61
    %v94 = vmul.f32 %v62, %v62
    %v95 = vmul.f32 %v63, %v63
    %v96 = vmul.f32 %v64, %v64
    %97 = vst [vmem:[#allocation2 + $0x80] sm:$0xff] %v89
    %98 = vst [vmem:[#allocation2 + $0x88] sm:$0xff] %v90
    %99 = vst [vmem:[#allocation2 + $0x90] sm:$0xff] %v91
    %100 = vst [vmem:[#allocation2 + $0x98] sm:$0xff] %v92
    %101 = vst [vmem:[#allocation2 + $0xa0] sm:$0xff] %v93
    %102 = vst [vmem:[#allocation2 + $0xa8] sm:$0xff] %v94
    %103 = vst [vmem:[#allocation2 + $0xb0] sm:$0xff] %v95
    %104 = vst [vmem:[#allocation2 + $0xb8] sm:$0xff] %v96
    %v105 = vmul.f32 %v65, %v65
    %v106 = vmul.f32 %v66, %v66
    %v107 = vmul.f32 %v67, %v67
    %v108 = vmul.f32 %v68, %v68
    %v109 = vmul.f32 %v69, %v69
    %v110 = vmul.f32 %v70, %v70
    %v111 = vmul.f32 %v71, %v71
    %v112 = vmul.f32 %v72, %v72
    %113 = vst [vmem:[#allocation2 + $0xc0] sm:$0xff] %v105
    %114 = vst [vmem:[#allocation2 + $0xc8] sm:$0xff] %v106
    %115 = vst [vmem:[#allocation2 + $0xd0] sm:$0xff] %v107
    %116 = vst [vmem:[#allocation2 + $0xd8] sm:$0xff] %v108
    %117 = vst [vmem:[#allocation2 + $0xe0] sm:$0xff] %v109
    %118 = vst [vmem:[#allocation2 + $0xe8] sm:$0xff] %v110
    %119 = vst [vmem:[#allocation2 + $0xf0] sm:$0xff] %v111
    %120 = vst [vmem:[#allocation2 + $0xf8] sm:$0xff] %v112
    %v121 = vmul.f32 %v57, %v65
    %v122 = vmul.f32 %v58, %v66
    %v123 = vmul.f32 %v59, %v67
    %v124 = vmul.f32 %v60, %v68
    %v125 = vmul.f32 %v61, %v69
    %v126 = vmul.f32 %v62, %v70
    %v127 = vmul.f32 %v63, %v71
    %v128 = vmul.f32 %v64, %v72
    %129 = vst [vmem:[#allocation2 + $0x100] sm:$0xff] %v121
    %130 = vst [vmem:[#allocation2 + $0x108] sm:$0xff] %v122
    %131 = vst [vmem:[#allocation2 + $0x110] sm:$0xff] %v123
    %132 = vst [vmem:[#allocation2 + $0x118] sm:$0xff] %v124
    %133 = vst [vmem:[#allocation2 + $0x120] sm:$0xff] %v125
    %134 = vst [vmem:[#allocation2 + $0x128] sm:$0xff] %v126
    %135 = vst [vmem:[#allocation2 + $0x130] sm:$0xff] %v127
    %136 = vst [vmem:[#allocation2 + $0x138] sm:$0xff] %v128
    %v137 = vld [vmem:[#allocation2] sm:$0xff]
    %v138 = vld [vmem:[#allocation2 + $0x8] sm:$0xff]
    %v139 = vld [vmem:[#allocation2 + $0x10] sm:$0xff]
    %v140 = vld [vmem:[#allocation2 + $0x18] sm:$0xff]
    %v141 = vld [vmem:[#allocation2 + $0x20] sm:$0xff]
    %v142 = vld [vmem:[#allocation2 + $0x28] sm:$0xff]
    %v143 = vld [vmem:[#allocation2 + $0x30] sm:$0xff]
    %v144 = vld [vmem:[#allocation2 + $0x38] sm:$0xff]
    %v145 = vld [vmem:[#allocation2 + $0x40] sm:$0xff]
    %v146 = vld [vmem:[#allocation2 + $0x48] sm:$0xff]
    %v147 = vld [vmem:[#allocation2 + $0x50] sm:$0xff]
    %v148 = vld [vmem:[#allocation2 + $0x58] sm:$0xff]
    %v149 = vld [vmem:[#allocation2 + $0x60] sm:$0xff]
    %v150 = vld [vmem:[#allocation2 + $0x68] sm:$0xff]
    %v151 = vld [vmem:[#allocation2 + $0x70] sm:$0xff]
    %v152 = vld [vmem:[#allocation2 + $0x78] sm:$0xff]
    %v153 = vld [vmem:[#allocation2 + $0x80] sm:$0xff]
    %v154 = vld [vmem:[#allocation2 + $0x88] sm:$0xff]
    %v155 = vld [vmem:[#allocation2 + $0x90] sm:$0xff]
    %v156 = vld [vmem:[#allocation2 + $0x98] sm:$0xff]
    %v157 = vld [vmem:[#allocation2 + $0xa0] sm:$0xff]
    %v158 = vld [vmem:[#allocation2 + $0xa8] sm:$0xff]
    %v159 = vld [vmem:[#allocation2 + $0xb0] sm:$0xff]
    %v160 = vld [vmem:[#allocation2 + $0xb8] sm:$0xff]
    %v161 = vld [vmem:[#allocation2 + $0xc0] sm:$0xff]
    %v162 = vld [vmem:[#allocation2 + $0xc8] sm:$0xff]
    %v163 = vld [vmem:[#allocation2 + $0xd0] sm:$0xff]
    %v164 = vld [vmem:[#allocation2 + $0xd8] sm:$0xff]
    %v165 = vld [vmem:[#allocation2 + $0xe0] sm:$0xff]
    %v166 = vld [vmem:[#allocation2 + $0xe8] sm:$0xff]
    %v167 = vld [vmem:[#allocation2 + $0xf0] sm:$0xff]
    %v168 = vld [vmem:[#allocation2 + $0xf8] sm:$0xff]
    %v169 = vld [vmem:[#allocation2 + $0x100] sm:$0xff]
    %v170 = vld [vmem:[#allocation2 + $0x108] sm:$0xff]
    %v171 = vld [vmem:[#allocation2 + $0x110] sm:$0xff]
    %v172 = vld [vmem:[#allocation2 + $0x118] sm:$0xff]
    %v173 = vld [vmem:[#allocation2 + $0x120] sm:$0xff]
    %v174 = vld [vmem:[#allocation2 + $0x128] sm:$0xff]
    %v175 = vld [vmem:[#allocation2 + $0x130] sm:$0xff]
    %v176 = vld [vmem:[#allocation2 + $0x138] sm:$0xff]
    %v177 = vld [vmem:[#allocation3] sm:$0xff]
    %v178 = vld [vmem:[#allocation3 + $0x8] sm:$0xff]
    %v179 = vld [vmem:[#allocation3 + $0x10] sm:$0xff]
    %v180 = vld [vmem:[#allocation3 + $0x18] sm:$0xff]
    %v181 = vld [vmem:[#allocation3 + $0x20] sm:$0xff]
    %v182 = vld [vmem:[#allocation3 + $0x28] sm:$0xff]
    %v183 = vld [vmem:[#allocation3 + $0x30] sm:$0xff]
    %v184 = vld [vmem:[#allocation3 + $0x38] sm:$0xff]
    %v185 = vld [vmem:[#allocation3 + $0x40] sm:$0xff]
    %v186 = vld [vmem:[#allocation3 + $0x48] sm:$0xff]
    %v187 = vld [vmem:[#allocation3 + $0x50] sm:$0xff]
    %v188 = vld [vmem:[#allocation3 + $0x58] sm:$0xff]
    %v189 = vld [vmem:[#allocation3 + $0x60] sm:$0xff]
    %v190 = vld [vmem:[#allocation3 + $0x68] sm:$0xff]
    %v191 = vld [vmem:[#allocation3 + $0x70] sm:$0xff]
    %v192 = vld [vmem:[#allocation3 + $0x78] sm:$0xff]
    %v193 = vld [vmem:[#allocation3 + $0x80] sm:$0xff]
    %v194 = vld [vmem:[#allocation3 + $0x88] sm:$0xff]
    %v195 = vld [vmem:[#allocation3 + $0x90] sm:$0xff]
    %v196 = vld [vmem:[#allocation3 + $0x98] sm:$0xff]
    %v197 = vld [vmem:[#allocation3 + $0xa0] sm:$0xff]
    %v198 = vld [vmem:[#allocation3 + $0xa8] sm:$0xff]
    %v199 = vld [vmem:[#allocation3 + $0xb0] sm:$0xff]
    %v200 = vld [vmem:[#allocation3 + $0xb8] sm:$0xff]
    %v201 = vld [vmem:[#allocation3 + $0xc0] sm:$0xff]
    %v202 = vld [vmem:[#allocation3 + $0xc8] sm:$0xff]
    %v203 = vld [vmem:[#allocation3 + $0xd0] sm:$0xff]
    %v204 = vld [vmem:[#allocation3 + $0xd8] sm:$0xff]
    %v205 = vld [vmem:[#allocation3 + $0xe0] sm:$0xff]
    %v206 = vld [vmem:[#allocation3 + $0xe8] sm:$0xff]
    %v207 = vld [vmem:[#allocation3 + $0xf0] sm:$0xff]
    %v208 = vld [vmem:[#allocation3 + $0xf8] sm:$0xff]
    %v209 = vld [vmem:[#allocation3 + $0x100] sm:$0xff]
    %v210 = vld [vmem:[#allocation3 + $0x108] sm:$0xff]
    %v211 = vld [vmem:[#allocation3 + $0x110] sm:$0xff]
    %v212 = vld [vmem:[#allocation3 + $0x118] sm:$0xff]
    %v213 = vld [vmem:[#allocation3 + $0x120] sm:$0xff]
    %v214 = vld [vmem:[#allocation3 + $0x128] sm:$0xff]
    %v215 = vld [vmem:[#allocation3 + $0x130] sm:$0xff]
    %v216 = vld [vmem:[#allocation3 + $0x138] sm:$0xff]
    %v217 = vld [vmem:[#allocation3 + $0x140] sm:$0xff]
    %v218 = vld [vmem:[#allocation3 + $0x148] sm:$0xff]
    %v219 = vld [vmem:[#allocation3 + $0x150] sm:$0xff]
    %v220 = vld [vmem:[#allocation3 + $0x158] sm:$0xff]
    %v221 = vld [vmem:[#allocation3 + $0x160] sm:$0xff]
    %v222 = vld [vmem:[#allocation3 + $0x168] sm:$0xff]
    %v223 = vld [vmem:[#allocation3 + $0x170] sm:$0xff]
    %v224 = vld [vmem:[#allocation3 + $0x178] sm:$0xff]
    %v225 = vld [vmem:[#allocation3 + $0x180] sm:$0xff]
    %v226 = vld [vmem:[#allocation3 + $0x188] sm:$0xff]
    %v227 = vld [vmem:[#allocation3 + $0x190] sm:$0xff]
    %v228 = vld [vmem:[#allocation3 + $0x198] sm:$0xff]
    %v229 = vld [vmem:[#allocation3 + $0x1a0] sm:$0xff]
    %v230 = vld [vmem:[#allocation3 + $0x1a8] sm:$0xff]
    %v231 = vld [vmem:[#allocation3 + $0x1b0] sm:$0xff]
    %v232 = vld [vmem:[#allocation3 + $0x1b8] sm:$0xff]
    %v233 = vld [vmem:[#allocation3 + $0x1c0] sm:$0xff]
    %v234 = vld [vmem:[#allocation3 + $0x1c8] sm:$0xff]
    %v235 = vld [vmem:[#allocation3 + $0x1d0] sm:$0xff]
    %v236 = vld [vmem:[#allocation3 + $0x1d8] sm:$0xff]
    %v237 = vld [vmem:[#allocation3 + $0x1e0] sm:$0xff]
    %v238 = vld [vmem:[#allocation3 + $0x1e8] sm:$0xff]
    %v239 = vld [vmem:[#allocation3 + $0x1f0] sm:$0xff]
    %v240 = vld [vmem:[#allocation3 + $0x1f8] sm:$0xff]
    %v241 = vld [vmem:[#allocation3 + $0x200] sm:$0xff]
    %v242 = vld [vmem:[#allocation3 + $0x208] sm:$0xff]
    %v243 = vld [vmem:[#allocation3 + $0x210] sm:$0xff]
    %v244 = vld [vmem:[#allocation3 + $0x218] sm:$0xff]
    %v245 = vld [vmem:[#allocation3 + $0x220] sm:$0xff]
    %v246 = vld [vmem:[#allocation3 + $0x228] sm:$0xff]
    %v247 = vld [vmem:[#allocation3 + $0x230] sm:$0xff]
    %v248 = vld [vmem:[#allocation3 + $0x238] sm:$0xff]
    %v249 = vld [vmem:[#allocation3 + $0x240] sm:$0xff]
    %v250 = vld [vmem:[#allocation3 + $0x248] sm:$0xff]
    %v251 = vld [vmem:[#allocation3 + $0x250] sm:$0xff]
    %v252 = vld [vmem:[#allocation3 + $0x258] sm:$0xff]
    %v253 = vld [vmem:[#allocation3 + $0x260] sm:$0xff]
    %v254 = vld [vmem:[#allocation3 + $0x268] sm:$0xff]
    %v255 = vld [vmem:[#allocation3 + $0x270] sm:$0xff]
    %v256 = vld [vmem:[#allocation3 + $0x278] sm:$0xff]
    %v257 = vld [vmem:[#allocation3 + $0x280] sm:$0xff]
    %v258 = vld [vmem:[#allocation3 + $0x288] sm:$0xff]
    %v259 = vld [vmem:[#allocation3 + $0x290] sm:$0xff]
    %v260 = vld [vmem:[#allocation3 + $0x298] sm:$0xff]
    %v261 = vld [vmem:[#allocation3 + $0x2a0] sm:$0xff]
    %v262 = vld [vmem:[#allocation3 + $0x2a8] sm:$0xff]
    %v263 = vld [vmem:[#allocation3 + $0x2b0] sm:$0xff]
    %v264 = vld [vmem:[#allocation3 + $0x2b8] sm:$0xff]
    %v265 = vld [vmem:[#allocation3 + $0x2c0] sm:$0xff]
    %v266 = vld [vmem:[#allocation3 + $0x2c8] sm:$0xff]
    %v267 = vld [vmem:[#allocation3 + $0x2d0] sm:$0xff]
    %v268 = vld [vmem:[#allocation3 + $0x2d8] sm:$0xff]
    %v269 = vld [vmem:[#allocation3 + $0x2e0] sm:$0xff]
    %v270 = vld [vmem:[#allocation3 + $0x2e8] sm:$0xff]
    %v271 = vld [vmem:[#allocation3 + $0x2f0] sm:$0xff]
    %v272 = vld [vmem:[#allocation3 + $0x2f8] sm:$0xff]
    %v273 = vld [vmem:[#allocation3 + $0x300] sm:$0xff]
    %v274 = vld [vmem:[#allocation3 + $0x308] sm:$0xff]
    %v275 = vld [vmem:[#allocation3 + $0x310] sm:$0xff]
    %v276 = vld [vmem:[#allocation3 + $0x318] sm:$0xff]
    %v277 = vld [vmem:[#allocation3 + $0x320] sm:$0xff]
    %v278 = vld [vmem:[#allocation3 + $0x328] sm:$0xff]
    %v279 = vld [vmem:[#allocation3 + $0x330] sm:$0xff]
    %v280 = vld [vmem:[#allocation3 + $0x338] sm:$0xff]
    %v281 = vld [vmem:[#allocation3 + $0x340] sm:$0xff]
    %v282 = vld [vmem:[#allocation3 + $0x348] sm:$0xff]
    %v283 = vld [vmem:[#allocation3 + $0x350] sm:$0xff]
    %v284 = vld [vmem:[#allocation3 + $0x358] sm:$0xff]
    %v285 = vld [vmem:[#allocation3 + $0x360] sm:$0xff]
    %v286 = vld [vmem:[#allocation3 + $0x368] sm:$0xff]
    %v287 = vld [vmem:[#allocation3 + $0x370] sm:$0xff]
    %v288 = vld [vmem:[#allocation3 + $0x378] sm:$0xff]
    %v289 = vld [vmem:[#allocation3 + $0x380] sm:$0xff]
    %v290 = vld [vmem:[#allocation3 + $0x388] sm:$0xff]
    %v291 = vld [vmem:[#allocation3 + $0x390] sm:$0xff]
    %v292 = vld [vmem:[#allocation3 + $0x398] sm:$0xff]
    %v293 = vld [vmem:[#allocation3 + $0x3a0] sm:$0xff]
    %v294 = vld [vmem:[#allocation3 + $0x3a8] sm:$0xff]
    %v295 = vld [vmem:[#allocation3 + $0x3b0] sm:$0xff]
    %v296 = vld [vmem:[#allocation3 + $0x3b8] sm:$0xff]
    %v297 = vld [vmem:[#allocation3 + $0x3c0] sm:$0xff]
    %v298 = vld [vmem:[#allocation3 + $0x3c8] sm:$0xff]
    %v299 = vld [vmem:[#allocation3 + $0x3d0] sm:$0xff]
    %v300 = vld [vmem:[#allocation3 + $0x3d8] sm:$0xff]
    %v301 = vld [vmem:[#allocation3 + $0x3e0] sm:$0xff]
    %v302 = vld [vmem:[#allocation3 + $0x3e8] sm:$0xff]
    %v303 = vld [vmem:[#allocation3 + $0x3f0] sm:$0xff]
    %v304 = vld [vmem:[#allocation3 + $0x3f8] sm:$0xff]
    %v305 = vld [vmem:[#allocation3 + $0x400] sm:$0xff]
    %v306 = vld [vmem:[#allocation3 + $0x408] sm:$0xff]
    %v307 = vld [vmem:[#allocation3 + $0x410] sm:$0xff]
    %v308 = vld [vmem:[#allocation3 + $0x418] sm:$0xff]
    %v309 = vld [vmem:[#allocation3 + $0x420] sm:$0xff]
    %v310 = vld [vmem:[#allocation3 + $0x428] sm:$0xff]
    %v311 = vld [vmem:[#allocation3 + $0x430] sm:$0xff]
    %v312 = vld [vmem:[#allocation3 + $0x438] sm:$0xff]
    %v313 = vld [vmem:[#allocation3 + $0x440] sm:$0xff]
    %v314 = vld [vmem:[#allocation3 + $0x448] sm:$0xff]
    %v315 = vld [vmem:[#allocation3 + $0x450] sm:$0xff]
    %v316 = vld [vmem:[#allocation3 + $0x458] sm:$0xff]
    %v317 = vld [vmem:[#allocation3 + $0x460] sm:$0xff]
    %v318 = vld [vmem:[#allocation3 + $0x468] sm:$0xff]
    %v319 = vld [vmem:[#allocation3 + $0x470] sm:$0xff]
    %v320 = vld [vmem:[#allocation3 + $0x478] sm:$0xff]
    %v321 = vld [vmem:[#allocation3 + $0x480] sm:$0xff]
    %v322 = vld [vmem:[#allocation3 + $0x488] sm:$0xff]
    %v323 = vld [vmem:[#allocation3 + $0x490] sm:$0xff]
    %v324 = vld [vmem:[#allocation3 + $0x498] sm:$0xff]
    %v325 = vld [vmem:[#allocation3 + $0x4a0] sm:$0xff]
    %v326 = vld [vmem:[#allocation3 + $0x4a8] sm:$0xff]
    %v327 = vld [vmem:[#allocation3 + $0x4b0] sm:$0xff]
    %v328 = vld [vmem:[#allocation3 + $0x4b8] sm:$0xff]
    %v329 = vld [vmem:[#allocation3 + $0x4c0] sm:$0xff]
    %v330 = vld [vmem:[#allocation3 + $0x4c8] sm:$0xff]
    %v331 = vld [vmem:[#allocation3 + $0x4d0] sm:$0xff]
    %v332 = vld [vmem:[#allocation3 + $0x4d8] sm:$0xff]
    %v333 = vld [vmem:[#allocation3 + $0x4e0] sm:$0xff]
    %v334 = vld [vmem:[#allocation3 + $0x4e8] sm:$0xff]
    %v335 = vld [vmem:[#allocation3 + $0x4f0] sm:$0xff]
    %v336 = vld [vmem:[#allocation3 + $0x4f8] sm:$0xff]
    %v337 = vld [vmem:[#allocation3 + $0x500] sm:$0xff]
    %v338 = vld [vmem:[#allocation3 + $0x508] sm:$0xff]
    %v339 = vld [vmem:[#allocation3 + $0x510] sm:$0xff]
    %v340 = vld [vmem:[#allocation3 + $0x518] sm:$0xff]
    %v341 = vld [vmem:[#allocation3 + $0x520] sm:$0xff]
    %v342 = vld [vmem:[#allocation3 + $0x528] sm:$0xff]
    %v343 = vld [vmem:[#allocation3 + $0x530] sm:$0xff]
    %v344 = vld [vmem:[#allocation3 + $0x538] sm:$0xff]
    %v345 = vld [vmem:[#allocation3 + $0x540] sm:$0xff]
    %v346 = vld [vmem:[#allocation3 + $0x548] sm:$0xff]
    %v347 = vld [vmem:[#allocation3 + $0x550] sm:$0xff]
    %v348 = vld [vmem:[#allocation3 + $0x558] sm:$0xff]
    %v349 = vld [vmem:[#allocation3 + $0x560] sm:$0xff]
    %v350 = vld [vmem:[#allocation3 + $0x568] sm:$0xff]
    %v351 = vld [vmem:[#allocation3 + $0x570] sm:$0xff]
    %v352 = vld [vmem:[#allocation3 + $0x578] sm:$0xff]
    %v353 = vld [vmem:[#allocation3 + $0x580] sm:$0xff]
    %v354 = vld [vmem:[#allocation3 + $0x588] sm:$0xff]
    %v355 = vld [vmem:[#allocation3 + $0x590] sm:$0xff]
    %v356 = vld [vmem:[#allocation3 + $0x598] sm:$0xff]
    %v357 = vld [vmem:[#allocation3 + $0x5a0] sm:$0xff]
    %v358 = vld [vmem:[#allocation3 + $0x5a8] sm:$0xff]
    %v359 = vld [vmem:[#allocation3 + $0x5b0] sm:$0xff]
    %v360 = vld [vmem:[#allocation3 + $0x5b8] sm:$0xff]
    %v361 = vld [vmem:[#allocation3 + $0x5c0] sm:$0xff]
    %v362 = vld [vmem:[#allocation3 + $0x5c8] sm:$0xff]
    %v363 = vld [vmem:[#allocation3 + $0x5d0] sm:$0xff]
    %v364 = vld [vmem:[#allocation3 + $0x5d8] sm:$0xff]
    %v365 = vld [vmem:[#allocation3 + $0x5e0] sm:$0xff]
    %v366 = vld [vmem:[#allocation3 + $0x5e8] sm:$0xff]
    %v367 = vld [vmem:[#allocation3 + $0x5f0] sm:$0xff]
    %v368 = vld [vmem:[#allocation3 + $0x5f8] sm:$0xff]
    %v369 = vld [vmem:[#allocation3 + $0x600] sm:$0xff]
    %v370 = vld [vmem:[#allocation3 + $0x608] sm:$0xff]
    %v371 = vld [vmem:[#allocation3 + $0x610] sm:$0xff]
    %v372 = vld [vmem:[#allocation3 + $0x618] sm:$0xff]
    %v373 = vld [vmem:[#allocation3 + $0x620] sm:$0xff]
    %v374 = vld [vmem:[#allocation3 + $0x628] sm:$0xff]
    %v375 = vld [vmem:[#allocation3 + $0x630] sm:$0xff]
    %v376 = vld [vmem:[#allocation3 + $0x638] sm:$0xff]
    %v377 = vld [vmem:[#allocation3 + $0x640] sm:$0xff]
    %v378 = vld [vmem:[#allocation3 + $0x648] sm:$0xff]
    %v379 = vld [vmem:[#allocation3 + $0x650] sm:$0xff]
    %v380 = vld [vmem:[#allocation3 + $0x658] sm:$0xff]
    %v381 = vld [vmem:[#allocation3 + $0x660] sm:$0xff]
    %v382 = vld [vmem:[#allocation3 + $0x668] sm:$0xff]
    %v383 = vld [vmem:[#allocation3 + $0x670] sm:$0xff]
    %v384 = vld [vmem:[#allocation3 + $0x678] sm:$0xff]
    %v385 = vld [vmem:[#allocation3 + $0x680] sm:$0xff]
    %v386 = vld [vmem:[#allocation3 + $0x688] sm:$0xff]
    %v387 = vld [vmem:[#allocation3 + $0x690] sm:$0xff]
    %v388 = vld [vmem:[#allocation3 + $0x698] sm:$0xff]
    %v389 = vld [vmem:[#allocation3 + $0x6a0] sm:$0xff]
    %v390 = vld [vmem:[#allocation3 + $0x6a8] sm:$0xff]
    %v391 = vld [vmem:[#allocation3 + $0x6b0] sm:$0xff]
    %v392 = vld [vmem:[#allocation3 + $0x6b8] sm:$0xff]
    %v393 = vld [vmem:[#allocation3 + $0x6c0] sm:$0xff]
    %v394 = vld [vmem:[#allocation3 + $0x6c8] sm:$0xff]
    %v395 = vld [vmem:[#allocation3 + $0x6d0] sm:$0xff]
    %v396 = vld [vmem:[#allocation3 + $0x6d8] sm:$0xff]
    %v397 = vld [vmem:[#allocation3 + $0x6e0] sm:$0xff]
    %v398 = vld [vmem:[#allocation3 + $0x6e8] sm:$0xff]
    %v399 = vld [vmem:[#allocation3 + $0x6f0] sm:$0xff]
    %v400 = vld [vmem:[#allocation3 + $0x6f8] sm:$0xff]
    %v401 = vld [vmem:[#allocation3 + $0x700] sm:$0xff]
    %v402 = vld [vmem:[#allocation3 + $0x708] sm:$0xff]
    %v403 = vld [vmem:[#allocation3 + $0x710] sm:$0xff]
    %v404 = vld [vmem:[#allocation3 + $0x718] sm:$0xff]
    %v405 = vld [vmem:[#allocation3 + $0x720] sm:$0xff]
    %v406 = vld [vmem:[#allocation3 + $0x728] sm:$0xff]
    %v407 = vld [vmem:[#allocation3 + $0x730] sm:$0xff]
    %v408 = vld [vmem:[#allocation3 + $0x738] sm:$0xff]
    %v409 = vld [vmem:[#allocation3 + $0x740] sm:$0xff]
    %v410 = vld [vmem:[#allocation3 + $0x748] sm:$0xff]
    %v411 = vld [vmem:[#allocation3 + $0x750] sm:$0xff]
    %v412 = vld [vmem:[#allocation3 + $0x758] sm:$0xff]
    %v413 = vld [vmem:[#allocation3 + $0x760] sm:$0xff]
    %v414 = vld [vmem:[#allocation3 + $0x768] sm:$0xff]
    %v415 = vld [vmem:[#allocation3 + $0x770] sm:$0xff]
    %v416 = vld [vmem:[#allocation3 + $0x778] sm:$0xff]
    %v417 = vld [vmem:[#allocation3 + $0x780] sm:$0xff]
    %v418 = vld [vmem:[#allocation3 + $0x788] sm:$0xff]
    %v419 = vld [vmem:[#allocation3 + $0x790] sm:$0xff]
    %v420 = vld [vmem:[#allocation3 + $0x798] sm:$0xff]
    %v421 = vld [vmem:[#allocation3 + $0x7a0] sm:$0xff]
    %v422 = vld [vmem:[#allocation3 + $0x7a8] sm:$0xff]
    %v423 = vld [vmem:[#allocation3 + $0x7b0] sm:$0xff]
    %v424 = vld [vmem:[#allocation3 + $0x7b8] sm:$0xff]
    %v425 = vld [vmem:[#allocation3 + $0x7c0] sm:$0xff]
    %v426 = vld [vmem:[#allocation3 + $0x7c8] sm:$0xff]
    %v427 = vld [vmem:[#allocation3 + $0x7d0] sm:$0xff]
    %v428 = vld [vmem:[#allocation3 + $0x7d8] sm:$0xff]
    %v429 = vld [vmem:[#allocation3 + $0x7e0] sm:$0xff]
    %v430 = vld [vmem:[#allocation3 + $0x7e8] sm:$0xff]
    %v431 = vld [vmem:[#allocation3 + $0x7f0] sm:$0xff]
    %v432 = vld [vmem:[#allocation3 + $0x7f8] sm:$0xff]
    %v433 = vld [vmem:[#allocation3 + $0x800] sm:$0xff]
    %v434 = vld [vmem:[#allocation3 + $0x808] sm:$0xff]
    %v435 = vld [vmem:[#allocation3 + $0x810] sm:$0xff]
    %v436 = vld [vmem:[#allocation3 + $0x818] sm:$0xff]
    %v437 = vld [vmem:[#allocation3 + $0x820] sm:$0xff]
    %v438 = vld [vmem:[#allocation3 + $0x828] sm:$0xff]
    %v439 = vld [vmem:[#allocation3 + $0x830] sm:$0xff]
    %v440 = vld [vmem:[#allocation3 + $0x838] sm:$0xff]
    %v441 = vld [vmem:[#allocation3 + $0x840] sm:$0xff]
    %v442 = vld [vmem:[#allocation3 + $0x848] sm:$0xff]
    %v443 = vld [vmem:[#allocation3 + $0x850] sm:$0xff]
    %v444 = vld [vmem:[#allocation3 + $0x858] sm:$0xff]
    %v445 = vld [vmem:[#allocation3 + $0x860] sm:$0xff]
    %v446 = vld [vmem:[#allocation3 + $0x868] sm:$0xff]
    %v447 = vld [vmem:[#allocation3 + $0x870] sm:$0xff]
    %v448 = vld [vmem:[#allocation3 + $0x878] sm:$0xff]
    %v449 = vld [vmem:[#allocation3 + $0x880] sm:$0xff]
    %v450 = vld [vmem:[#allocation3 + $0x888] sm:$0xff]
    %v451 = vld [vmem:[#allocation3 + $0x890] sm:$0xff]
    %v452 = vld [vmem:[#allocation3 + $0x898] sm:$0xff]
    %v453 = vld [vmem:[#allocation3 + $0x8a0] sm:$0xff]
    %v454 = vld [vmem:[#allocation3 + $0x8a8] sm:$0xff]
    %v455 = vld [vmem:[#allocation3 + $0x8b0] sm:$0xff]
    %v456 = vld [vmem:[#allocation3 + $0x8b8] sm:$0xff]
    %v457 = vld [vmem:[#allocation3 + $0x8c0] sm:$0xff]
    %v458 = vld [vmem:[#allocation3 + $0x8c8] sm:$0xff]
    %v459 = vld [vmem:[#allocation3 + $0x8d0] sm:$0xff]
    %v460 = vld [vmem:[#allocation3 + $0x8d8] sm:$0xff]
    %v461 = vld [vmem:[#allocation3 + $0x8e0] sm:$0xff]
    %v462 = vld [vmem:[#allocation3 + $0x8e8] sm:$0xff]
    %v463 = vld [vmem:[#allocation3 + $0x8f0] sm:$0xff]
    %v464 = vld [vmem:[#allocation3 + $0x8f8] sm:$0xff]
    %v465 = vld [vmem:[#allocation3 + $0x900] sm:$0xff]
    %v466 = vld [vmem:[#allocation3 + $0x908] sm:$0xff]
    %v467 = vld [vmem:[#allocation3 + $0x910] sm:$0xff]
    %v468 = vld [vmem:[#allocation3 + $0x918] sm:$0xff]
    %v469 = vld [vmem:[#allocation3 + $0x920] sm:$0xff]
    %v470 = vld [vmem:[#allocation3 + $0x928] sm:$0xff]
    %v471 = vld [vmem:[#allocation3 + $0x930] sm:$0xff]
    %v472 = vld [vmem:[#allocation3 + $0x938] sm:$0xff]
    %v473 = vld [vmem:[#allocation3 + $0x940] sm:$0xff]
    %v474 = vld [vmem:[#allocation3 + $0x948] sm:$0xff]
    %v475 = vld [vmem:[#allocation3 + $0x950] sm:$0xff]
    %v476 = vld [vmem:[#allocation3 + $0x958] sm:$0xff]
    %v477 = vld [vmem:[#allocation3 + $0x960] sm:$0xff]
    %v478 = vld [vmem:[#allocation3 + $0x968] sm:$0xff]
    %v479 = vld [vmem:[#allocation3 + $0x970] sm:$0xff]
    %v480 = vld [vmem:[#allocation3 + $0x978] sm:$0xff]
    %v481 = vld [vmem:[#allocation3 + $0x980] sm:$0xff]
    %v482 = vld [vmem:[#allocation3 + $0x988] sm:$0xff]
    %v483 = vld [vmem:[#allocation3 + $0x990] sm:$0xff]
    %v484 = vld [vmem:[#allocation3 + $0x998] sm:$0xff]
    %v485 = vld [vmem:[#allocation3 + $0x9a0] sm:$0xff]
    %v486 = vld [vmem:[#allocation3 + $0x9a8] sm:$0xff]
    %v487 = vld [vmem:[#allocation3 + $0x9b0] sm:$0xff]
    %v488 = vld [vmem:[#allocation3 + $0x9b8] sm:$0xff]
    %v489 = vld [vmem:[#allocation3 + $0x9c0] sm:$0xff]
    %v490 = vld [vmem:[#allocation3 + $0x9c8] sm:$0xff]
    %v491 = vld [vmem:[#allocation3 + $0x9d0] sm:$0xff]
    %v492 = vld [vmem:[#allocation3 + $0x9d8] sm:$0xff]
    %v493 = vld [vmem:[#allocation3 + $0x9e0] sm:$0xff]
    %v494 = vld [vmem:[#allocation3 + $0x9e8] sm:$0xff]
    %v495 = vld [vmem:[#allocation3 + $0x9f0] sm:$0xff]
    %v496 = vld [vmem:[#allocation3 + $0x9f8] sm:$0xff]
    %v497 = vld [vmem:[#allocation3 + $0xa00] sm:$0xff]
    %v498 = vld [vmem:[#allocation3 + $0xa08] sm:$0xff]
    %v499 = vld [vmem:[#allocation3 + $0xa10] sm:$0xff]
    %v500 = vld [vmem:[#allocation3 + $0xa18] sm:$0xff]
    %v501 = vld [vmem:[#allocation3 + $0xa20] sm:$0xff]
    %v502 = vld [vmem:[#allocation3 + $0xa28] sm:$0xff]
    %v503 = vld [vmem:[#allocation3 + $0xa30] sm:$0xff]
    %v504 = vld [vmem:[#allocation3 + $0xa38] sm:$0xff]
    %v505 = vld [vmem:[#allocation3 + $0xa40] sm:$0xff]
    %v506 = vld [vmem:[#allocation3 + $0xa48] sm:$0xff]
    %v507 = vld [vmem:[#allocation3 + $0xa50] sm:$0xff]
    %v508 = vld [vmem:[#allocation3 + $0xa58] sm:$0xff]
    %v509 = vld [vmem:[#allocation3 + $0xa60] sm:$0xff]
    %v510 = vld [vmem:[#allocation3 + $0xa68] sm:$0xff]
    %v511 = vld [vmem:[#allocation3 + $0xa70] sm:$0xff]
    %v512 = vld [vmem:[#allocation3 + $0xa78] sm:$0xff]
    %v513 = vld [vmem:[#allocation3 + $0xa80] sm:$0xff]
    %v514 = vld [vmem:[#allocation3 + $0xa88] sm:$0xff]
    %v515 = vld [vmem:[#allocation3 + $0xa90] sm:$0xff]
    %v516 = vld [vmem:[#allocation3 + $0xa98] sm:$0xff]
    %v517 = vld [vmem:[#allocation3 + $0xaa0] sm:$0xff]
    %v518 = vld [vmem:[#allocation3 + $0xaa8] sm:$0xff]
    %v519 = vld [vmem:[#allocation3 + $0xab0] sm:$0xff]
    %v520 = vld [vmem:[#allocation3 + $0xab8] sm:$0xff]
    %v521 = vld [vmem:[#allocation3 + $0xac0] sm:$0xff]
    %v522 = vld [vmem:[#allocation3 + $0xac8] sm:$0xff]
    %v523 = vld [vmem:[#allocation3 + $0xad0] sm:$0xff]
    %v524 = vld [vmem:[#allocation3 + $0xad8] sm:$0xff]
    %v525 = vld [vmem:[#allocation3 + $0xae0] sm:$0xff]
    %v526 = vld [vmem:[#allocation3 + $0xae8] sm:$0xff]
    %v527 = vld [vmem:[#allocation3 + $0xaf0] sm:$0xff]
    %v528 = vld [vmem:[#allocation3 + $0xaf8] sm:$0xff]
    %v529 = vld [vmem:[#allocation3 + $0xb00] sm:$0xff]
    %v530 = vld [vmem:[#allocation3 + $0xb08] sm:$0xff]
    %v531 = vld [vmem:[#allocation3 + $0xb10] sm:$0xff]
    %v532 = vld [vmem:[#allocation3 + $0xb18] sm:$0xff]
    %v533 = vld [vmem:[#allocation3 + $0xb20] sm:$0xff]
    %v534 = vld [vmem:[#allocation3 + $0xb28] sm:$0xff]
    %v535 = vld [vmem:[#allocation3 + $0xb30] sm:$0xff]
    %v536 = vld [vmem:[#allocation3 + $0xb38] sm:$0xff]
    %v537 = vld [vmem:[#allocation3 + $0xb40] sm:$0xff]
    %v538 = vld [vmem:[#allocation3 + $0xb48] sm:$0xff]
    %v539 = vld [vmem:[#allocation3 + $0xb50] sm:$0xff]
    %v540 = vld [vmem:[#allocation3 + $0xb58] sm:$0xff]
    %v541 = vld [vmem:[#allocation3 + $0xb60] sm:$0xff]
    %v542 = vld [vmem:[#allocation3 + $0xb68] sm:$0xff]
    %v543 = vld [vmem:[#allocation3 + $0xb70] sm:$0xff]
    %v544 = vld [vmem:[#allocation3 + $0xb78] sm:$0xff]
    %v545 = vld [vmem:[#allocation3 + $0xb80] sm:$0xff]
    %v546 = vld [vmem:[#allocation3 + $0xb88] sm:$0xff]
    %v547 = vld [vmem:[#allocation3 + $0xb90] sm:$0xff]
    %v548 = vld [vmem:[#allocation3 + $0xb98] sm:$0xff]
    %v549 = vld [vmem:[#allocation3 + $0xba0] sm:$0xff]
    %v550 = vld [vmem:[#allocation3 + $0xba8] sm:$0xff]
    %v551 = vld [vmem:[#allocation3 + $0xbb0] sm:$0xff]
    %v552 = vld [vmem:[#allocation3 + $0xbb8] sm:$0xff]
    %v553 = vld [vmem:[#allocation3 + $0xbc0] sm:$0xff]
    %v554 = vld [vmem:[#allocation3 + $0xbc8] sm:$0xff]
    %v555 = vld [vmem:[#allocation3 + $0xbd0] sm:$0xff]
    %v556 = vld [vmem:[#allocation3 + $0xbd8] sm:$0xff]
    %v557 = vld [vmem:[#allocation3 + $0xbe0] sm:$0xff]
    %v558 = vld [vmem:[#allocation3 + $0xbe8] sm:$0xff]
    %v559 = vld [vmem:[#allocation3 + $0xbf0] sm:$0xff]
    %v560 = vld [vmem:[#allocation3 + $0xbf8] sm:$0xff]
    %v561 = vld [vmem:[#allocation3 + $0xc00] sm:$0xff]
    %v562 = vld [vmem:[#allocation3 + $0xc08] sm:$0xff]
    %v563 = vld [vmem:[#allocation3 + $0xc10] sm:$0xff]
    %v564 = vld [vmem:[#allocation3 + $0xc18] sm:$0xff]
    %v565 = vld [vmem:[#allocation3 + $0xc20] sm:$0xff]
    %v566 = vld [vmem:[#allocation3 + $0xc28] sm:$0xff]
    %v567 = vld [vmem:[#allocation3 + $0xc30] sm:$0xff]
    %v568 = vld [vmem:[#allocation3 + $0xc38] sm:$0xff]
    %v569 = vld [vmem:[#allocation3 + $0xc40] sm:$0xff]
    %v570 = vld [vmem:[#allocation3 + $0xc48] sm:$0xff]
    %v571 = vld [vmem:[#allocation3 + $0xc50] sm:$0xff]
    %v572 = vld [vmem:[#allocation3 + $0xc58] sm:$0xff]
    %v573 = vld [vmem:[#allocation3 + $0xc60] sm:$0xff]
    %v574 = vld [vmem:[#allocation3 + $0xc68] sm:$0xff]
    %v575 = vld [vmem:[#allocation3 + $0xc70] sm:$0xff]
    %v576 = vld [vmem:[#allocation3 + $0xc78] sm:$0xff]
    %v577 = vld [vmem:[#allocation3 + $0xc80] sm:$0xff]
    %v578 = vld [vmem:[#allocation3 + $0xc88] sm:$0xff]
    %v579 = vld [vmem:[#allocation3 + $0xc90] sm:$0xff]
    %v580 = vld [vmem:[#allocation3 + $0xc98] sm:$0xff]
    %v581 = vld [vmem:[#allocation3 + $0xca0] sm:$0xff]
    %v582 = vld [vmem:[#allocation3 + $0xca8] sm:$0xff]
    %v583 = vld [vmem:[#allocation3 + $0xcb0] sm:$0xff]
    %v584 = vld [vmem:[#allocation3 + $0xcb8] sm:$0xff]
    %v585 = vld [vmem:[#allocation3 + $0xcc0] sm:$0xff]
    %v586 = vld [vmem:[#allocation3 + $0xcc8] sm:$0xff]
    %v587 = vld [vmem:[#allocation3 + $0xcd0] sm:$0xff]
    %v588 = vld [vmem:[#allocation3 + $0xcd8] sm:$0xff]
    %v589 = vld [vmem:[#allocation3 + $0xce0] sm:$0xff]
    %v590 = vld [vmem:[#allocation3 + $0xce8] sm:$0xff]
    %v591 = vld [vmem:[#allocation3 + $0xcf0] sm:$0xff]
    %v592 = vld [vmem:[#allocation3 + $0xcf8] sm:$0xff]
    %v593 = vld [vmem:[#allocation3 + $0xd00] sm:$0xff]
    %v594 = vld [vmem:[#allocation3 + $0xd08] sm:$0xff]
    %v595 = vld [vmem:[#allocation3 + $0xd10] sm:$0xff]
    %v596 = vld [vmem:[#allocation3 + $0xd18] sm:$0xff]
    %v597 = vld [vmem:[#allocation3 + $0xd20] sm:$0xff]
    %v598 = vld [vmem:[#allocation3 + $0xd28] sm:$0xff]
    %v599 = vld [vmem:[#allocation3 + $0xd30] sm:$0xff]
    %v600 = vld [vmem:[#allocation3 + $0xd38] sm:$0xff]
    %v601 = vld [vmem:[#allocation3 + $0xd40] sm:$0xff]
    %v602 = vld [vmem:[#allocation3 + $0xd48] sm:$0xff]
    %v603 = vld [vmem:[#allocation3 + $0xd50] sm:$0xff]
    %v604 = vld [vmem:[#allocation3 + $0xd58] sm:$0xff]
    %v605 = vld [vmem:[#allocation3 + $0xd60] sm:$0xff]
    %v606 = vld [vmem:[#allocation3 + $0xd68] sm:$0xff]
    %v607 = vld [vmem:[#allocation3 + $0xd70] sm:$0xff]
    %v608 = vld [vmem:[#allocation3 + $0xd78] sm:$0xff]
    %v609 = vld [vmem:[#allocation3 + $0xd80] sm:$0xff]
    %v610 = vld [vmem:[#allocation3 + $0xd88] sm:$0xff]
    %v611 = vld [vmem:[#allocation3 + $0xd90] sm:$0xff]
    %v612 = vld [vmem:[#allocation3 + $0xd98] sm:$0xff]
    %v613 = vld [vmem:[#allocation3 + $0xda0] sm:$0xff]
    %v614 = vld [vmem:[#allocation3 + $0xda8] sm:$0xff]
    %v615 = vld [vmem:[#allocation3 + $0xdb0] sm:$0xff]
    %v616 = vld [vmem:[#allocation3 + $0xdb8] sm:$0xff]
    %v617 = vld [vmem:[#allocation3 + $0xdc0] sm:$0xff]
    %v618 = vld [vmem:[#allocation3 + $0xdc8] sm:$0xff]
    %v619 = vld [vmem:[#allocation3 + $0xdd0] sm:$0xff]
    %v620 = vld [vmem:[#allocation3 + $0xdd8] sm:$0xff]
    %v621 = vld [vmem:[#allocation3 + $0xde0] sm:$0xff]
    %v622 = vld [vmem:[#allocation3 + $0xde8] sm:$0xff]
    %v623 = vld [vmem:[#allocation3 + $0xdf0] sm:$0xff]
    %v624 = vld [vmem:[#allocation3 + $0xdf8] sm:$0xff]
    %v625 = vld [vmem:[#allocation3 + $0xe00] sm:$0xff]
    %v626 = vld [vmem:[#allocation3 + $0xe08] sm:$0xff]
    %v627 = vld [vmem:[#allocation3 + $0xe10] sm:$0xff]
    %v628 = vld [vmem:[#allocation3 + $0xe18] sm:$0xff]
    %v629 = vld [vmem:[#allocation3 + $0xe20] sm:$0xff]
    %v630 = vld [vmem:[#allocation3 + $0xe28] sm:$0xff]
    %v631 = vld [vmem:[#allocation3 + $0xe30] sm:$0xff]
    %v632 = vld [vmem:[#allocation3 + $0xe38] sm:$0xff]
    %v633 = vld [vmem:[#allocation3 + $0xe40] sm:$0xff]
    %v634 = vld [vmem:[#allocation3 + $0xe48] sm:$0xff]
    %v635 = vld [vmem:[#allocation3 + $0xe50] sm:$0xff]
    %v636 = vld [vmem:[#allocation3 + $0xe58] sm:$0xff]
    %v637 = vld [vmem:[#allocation3 + $0xe60] sm:$0xff]
    %v638 = vld [vmem:[#allocation3 + $0xe68] sm:$0xff]
    %v639 = vld [vmem:[#allocation3 + $0xe70] sm:$0xff]
    %v640 = vld [vmem:[#allocation3 + $0xe78] sm:$0xff]
    %v641 = vld [vmem:[#allocation3 + $0xe80] sm:$0xff]
    %v642 = vld [vmem:[#allocation3 + $0xe88] sm:$0xff]
    %v643 = vld [vmem:[#allocation3 + $0xe90] sm:$0xff]
    %v644 = vld [vmem:[#allocation3 + $0xe98] sm:$0xff]
    %v645 = vld [vmem:[#allocation3 + $0xea0] sm:$0xff]
    %v646 = vld [vmem:[#allocation3 + $0xea8] sm:$0xff]
    %v647 = vld [vmem:[#allocation3 + $0xeb0] sm:$0xff]
    %v648 = vld [vmem:[#allocation3 + $0xeb8] sm:$0xff]
    %v649 = vld [vmem:[#allocation3 + $0xec0] sm:$0xff]
    %v650 = vld [vmem:[#allocation3 + $0xec8] sm:$0xff]
    %v651 = vld [vmem:[#allocation3 + $0xed0] sm:$0xff]
    %v652 = vld [vmem:[#allocation3 + $0xed8] sm:$0xff]
    %v653 = vld [vmem:[#allocation3 + $0xee0] sm:$0xff]
    %v654 = vld [vmem:[#allocation3 + $0xee8] sm:$0xff]
    %v655 = vld [vmem:[#allocation3 + $0xef0] sm:$0xff]
    %v656 = vld [vmem:[#allocation3 + $0xef8] sm:$0xff]
    %v657 = vld [vmem:[#allocation3 + $0xf00] sm:$0xff]
    %v658 = vld [vmem:[#allocation3 + $0xf08] sm:$0xff]
    %v659 = vld [vmem:[#allocation3 + $0xf10] sm:$0xff]
    %v660 = vld [vmem:[#allocation3 + $0xf18] sm:$0xff]
    %v661 = vld [vmem:[#allocation3 + $0xf20] sm:$0xff]
    %v662 = vld [vmem:[#allocation3 + $0xf28] sm:$0xff]
    %v663 = vld [vmem:[#allocation3 + $0xf30] sm:$0xff]
    %v664 = vld [vmem:[#allocation3 + $0xf38] sm:$0xff]
    %v665 = vld [vmem:[#allocation3 + $0xf40] sm:$0xff]
    %v666 = vld [vmem:[#allocation3 + $0xf48] sm:$0xff]
    %v667 = vld [vmem:[#allocation3 + $0xf50] sm:$0xff]
    %v668 = vld [vmem:[#allocation3 + $0xf58] sm:$0xff]
    %v669 = vld [vmem:[#allocation3 + $0xf60] sm:$0xff]
    %v670 = vld [vmem:[#allocation3 + $0xf68] sm:$0xff]
    %v671 = vld [vmem:[#allocation3 + $0xf70] sm:$0xff]
    %v672 = vld [vmem:[#allocation3 + $0xf78] sm:$0xff]
    %v673 = vld [vmem:[#allocation3 + $0xf80] sm:$0xff]
    %v674 = vld [vmem:[#allocation3 + $0xf88] sm:$0xff]
    %v675 = vld [vmem:[#allocation3 + $0xf90] sm:$0xff]
    %v676 = vld [vmem:[#allocation3 + $0xf98] sm:$0xff]
    %v677 = vld [vmem:[#allocation3 + $0xfa0] sm:$0xff]
    %v678 = vld [vmem:[#allocation3 + $0xfa8] sm:$0xff]
    %v679 = vld [vmem:[#allocation3 + $0xfb0] sm:$0xff]
    %v680 = vld [vmem:[#allocation3 + $0xfb8] sm:$0xff]
    %v681 = vld [vmem:[#allocation3 + $0xfc0] sm:$0xff]
    %v682 = vld [vmem:[#allocation3 + $0xfc8] sm:$0xff]
    %v683 = vld [vmem:[#allocation3 + $0xfd0] sm:$0xff]
    %v684 = vld [vmem:[#allocation3 + $0xfd8] sm:$0xff]
    %v685 = vld [vmem:[#allocation3 + $0xfe0] sm:$0xff]
    %v686 = vld [vmem:[#allocation3 + $0xfe8] sm:$0xff]
    %v687 = vld [vmem:[#allocation3 + $0xff0] sm:$0xff]
    %v688 = vld [vmem:[#allocation3 + $0xff8] sm:$0xff]
    %689 = vmatpush.msra.mxu0 %v237
    %690 = vmatpush.msra.mxu0 %v233
    %691 = vmatpush.msra.mxu0 %v229
    %692 = vmatpush.msra.mxu0 %v225
    %693 = vmatpush.msra.mxu0 %v221
    %694 = vmatpush.msra.mxu0 %v217
    %695 = vmatpush.msra.mxu0 %v213
    %696 = vmatpush.msra.mxu0 %v209
    %697 = vmatpush.msra.mxu0 %v205
    %698 = vmatpush.msra.mxu0 %v201
    %699 = vmatpush.msra.mxu0 %v197
    %700 = vmatpush.msra.mxu0 %v193
    %701 = vmatpush.msra.mxu0 %v189
    %702 = vmatpush.msra.mxu0 %v185
    %703 = vmatpush.msra.mxu0 %v181
    %704 = vmatpush.msra.mxu0 %v177
    %705 = vmatmul.f32.gmra.mxu0 %v137
    %v706 = vpop.f32.mrf.mxu0
    %v707 = vadd.f32 0.0, %v706
    %708 = vmatmul.f32.gmra.mxu0 %v145
    %v709 = vpop.f32.mrf.mxu0
    %v710 = vadd.f32 0.0, %v709
    %711 = vmatmul.f32.gmra.mxu0 %v153
    %v712 = vpop.f32.mrf.mxu0
    %v713 = vadd.f32 0.0, %v712
    %714 = vmatmul.f32.gmra.mxu0 %v161
    %v715 = vpop.f32.mrf.mxu0
    %v716 = vadd.f32 0.0, %v715
    %717 = vmatmul.f32.gmra.mxu0 %v169
    %v718 = vpop.f32.mrf.mxu0
    %v719 = vadd.f32 0.0, %v718
    %720 = vdwg.mxu0
    %721 = vmatpush.msra.mxu0 %v301
    %722 = vmatpush.msra.mxu0 %v297
    %723 = vmatpush.msra.mxu0 %v293
    %724 = vmatpush.msra.mxu0 %v289
    %725 = vmatpush.msra.mxu0 %v285
    %726 = vmatpush.msra.mxu0 %v281
    %727 = vmatpush.msra.mxu0 %v277
    %728 = vmatpush.msra.mxu0 %v273
    %729 = vmatpush.msra.mxu0 %v269
    %730 = vmatpush.msra.mxu0 %v265
    %731 = vmatpush.msra.mxu0 %v261
    %732 = vmatpush.msra.mxu0 %v257
    %733 = vmatpush.msra.mxu0 %v253
    %734 = vmatpush.msra.mxu0 %v249
    %735 = vmatpush.msra.mxu0 %v245
    %736 = vmatpush.msra.mxu0 %v241
    %737 = vmatmul.f32.gmra.mxu0 %v138
    %v738 = vpop.f32.mrf.mxu0
    %v739 = vadd.f32 %v707, %v738
    %740 = vmatmul.f32.gmra.mxu0 %v146
    %v741 = vpop.f32.mrf.mxu0
    %v742 = vadd.f32 %v710, %v741
    %743 = vmatmul.f32.gmra.mxu0 %v154
    %v744 = vpop.f32.mrf.mxu0
    %v745 = vadd.f32 %v713, %v744
    %746 = vmatmul.f32.gmra.mxu0 %v162
    %v747 = vpop.f32.mrf.mxu0
    %v748 = vadd.f32 %v716, %v747
    %749 = vmatmul.f32.gmra.mxu0 %v170
    %v750 = vpop.f32.mrf.mxu0
    %v751 = vadd.f32 %v719, %v750
    %752 = vdwg.mxu0
    %753 = vmatpush.msra.mxu0 %v365
    %754 = vmatpush.msra.mxu0 %v361
    %755 = vmatpush.msra.mxu0 %v357
    %756 = vmatpush.msra.mxu0 %v353
    %757 = vmatpush.msra.mxu0 %v349
    %758 = vmatpush.msra.mxu0 %v345
    %759 = vmatpush.msra.mxu0 %v341
    %760 = vmatpush.msra.mxu0 %v337
    %761 = vmatpush.msra.mxu0 %v333
    %762 = vmatpush.msra.mxu0 %v329
    %763 = vmatpush.msra.mxu0 %v325
    %764 = vmatpush.msra.mxu0 %v321
    %765 = vmatpush.msra.mxu0 %v317
    %766 = vmatpush.msra.mxu0 %v313
    %767 = vmatpush.msra.mxu0 %v309
    %768 = vmatpush.msra.mxu0 %v305
    %769 = vmatmul.f32.gmra.mxu0 %v139
    %v770 = vpop.f32.mrf.mxu0
    %v771 = vadd.f32 %v739, %v770
    %772 = vmatmul.f32.gmra.mxu0 %v147
    %v773 = vpop.f32.mrf.mxu0
    %v774 = vadd.f32 %v742, %v773
    %775 = vmatmul.f32.gmra.mxu0 %v155
    %v776 = vpop.f32.mrf.mxu0
    %v777 = vadd.f32 %v745, %v776
    %778 = vmatmul.f32.gmra.mxu0 %v163
    %v779 = vpop.f32.mrf.mxu0
    %v780 = vadd.f32 %v748, %v779
    %781 = vmatmul.f32.gmra.mxu0 %v171
    %v782 = vpop.f32.mrf.mxu0
    %v783 = vadd.f32 %v751, %v782
    %784 = vdwg.mxu0
    %785 = vmatpush.msra.mxu0 %v429
    %786 = vmatpush.msra.mxu0 %v425
    %787 = vmatpush.msra.mxu0 %v421
    %788 = vmatpush.msra.mxu0 %v417
    %789 = vmatpush.msra.mxu0 %v413
    %790 = vmatpush.msra.mxu0 %v409
    %791 = vmatpush.msra.mxu0 %v405
    %792 = vmatpush.msra.mxu0 %v401
    %793 = vmatpush.msra.mxu0 %v397
    %794 = vmatpush.msra.mxu0 %v393
    %795 = vmatpush.msra.mxu0 %v389
    %796 = vmatpush.msra.mxu0 %v385
    %797 = vmatpush.msra.mxu0 %v381
    %798 = vmatpush.msra.mxu0 %v377
    %799 = vmatpush.msra.mxu0 %v373
    %800 = vmatpush.msra.mxu0 %v369
    %801 = vmatmul.f32.gmra.mxu0 %v140
    %v802 = vpop.f32.mrf.mxu0
    %v803 = vadd.f32 %v771, %v802
    %804 = vmatmul.f32.gmra.mxu0 %v148
    %v805 = vpop.f32.mrf.mxu0
    %v806 = vadd.f32 %v774, %v805
    %807 = vmatmul.f32.gmra.mxu0 %v156
    %v808 = vpop.f32.mrf.mxu0
    %v809 = vadd.f32 %v777, %v808
    %810 = vmatmul.f32.gmra.mxu0 %v164
    %v811 = vpop.f32.mrf.mxu0
    %v812 = vadd.f32 %v780, %v811
    %813 = vmatmul.f32.gmra.mxu0 %v172
    %v814 = vpop.f32.mrf.mxu0
    %v815 = vadd.f32 %v783, %v814
    %816 = vdwg.mxu0
    %817 = vmatpush.msra.mxu0 %v493
    %818 = vmatpush.msra.mxu0 %v489
    %819 = vmatpush.msra.mxu0 %v485
    %820 = vmatpush.msra.mxu0 %v481
    %821 = vmatpush.msra.mxu0 %v477
    %822 = vmatpush.msra.mxu0 %v473
    %823 = vmatpush.msra.mxu0 %v469
    %824 = vmatpush.msra.mxu0 %v465
    %825 = vmatpush.msra.mxu0 %v461
    %826 = vmatpush.msra.mxu0 %v457
    %827 = vmatpush.msra.mxu0 %v453
    %828 = vmatpush.msra.mxu0 %v449
    %829 = vmatpush.msra.mxu0 %v445
    %830 = vmatpush.msra.mxu0 %v441
    %831 = vmatpush.msra.mxu0 %v437
    %832 = vmatpush.msra.mxu0 %v433
    %833 = vmatmul.f32.gmra.mxu0 %v141
    %v834 = vpop.f32.mrf.mxu0
    %v835 = vadd.f32 %v803, %v834
    %836 = vmatmul.f32.gmra.mxu0 %v149
    %v837 = vpop.f32.mrf.mxu0
    %v838 = vadd.f32 %v806, %v837
    %839 = vmatmul.f32.gmra.mxu0 %v157
    %v840 = vpop.f32.mrf.mxu0
    %v841 = vadd.f32 %v809, %v840
    %842 = vmatmul.f32.gmra.mxu0 %v165
    %v843 = vpop.f32.mrf.mxu0
    %v844 = vadd.f32 %v812, %v843
    %845 = vmatmul.f32.gmra.mxu0 %v173
    %v846 = vpop.f32.mrf.mxu0
    %v847 = vadd.f32 %v815, %v846
    %848 = vdwg.mxu0
    %849 = vmatpush.msra.mxu0 %v557
    %850 = vmatpush.msra.mxu0 %v553
    %851 = vmatpush.msra.mxu0 %v549
    %852 = vmatpush.msra.mxu0 %v545
    %853 = vmatpush.msra.mxu0 %v541
    %854 = vmatpush.msra.mxu0 %v537
    %855 = vmatpush.msra.mxu0 %v533
    %856 = vmatpush.msra.mxu0 %v529
    %857 = vmatpush.msra.mxu0 %v525
    %858 = vmatpush.msra.mxu0 %v521
    %859 = vmatpush.msra.mxu0 %v517
    %860 = vmatpush.msra.mxu0 %v513
    %861 = vmatpush.msra.mxu0 %v509
    %862 = vmatpush.msra.mxu0 %v505
    %863 = vmatpush.msra.mxu0 %v501
    %864 = vmatpush.msra.mxu0 %v497
    %865 = vmatmul.f32.gmra.mxu0 %v142
    %v866 = vpop.f32.mrf.mxu0
    %v867 = vadd.f32 %v835, %v866
    %868 = vmatmul.f32.gmra.mxu0 %v150
    %v869 = vpop.f32.mrf.mxu0
    %v870 = vadd.f32 %v838, %v869
    %871 = vmatmul.f32.gmra.mxu0 %v158
    %v872 = vpop.f32.mrf.mxu0
    %v873 = vadd.f32 %v841, %v872
    %874 = vmatmul.f32.gmra.mxu0 %v166
    %v875 = vpop.f32.mrf.mxu0
    %v876 = vadd.f32 %v844, %v875
    %877 = vmatmul.f32.gmra.mxu0 %v174
    %v878 = vpop.f32.mrf.mxu0
    %v879 = vadd.f32 %v847, %v878
    %880 = vdwg.mxu0
    %881 = vmatpush.msra.mxu0 %v621
    %882 = vmatpush.msra.mxu0 %v617
    %883 = vmatpush.msra.mxu0 %v613
    %884 = vmatpush.msra.mxu0 %v609
    %885 = vmatpush.msra.mxu0 %v605
    %886 = vmatpush.msra.mxu0 %v601
    %887 = vmatpush.msra.mxu0 %v597
    %888 = vmatpush.msra.mxu0 %v593
    %889 = vmatpush.msra.mxu0 %v589
    %890 = vmatpush.msra.mxu0 %v585
    %891 = vmatpush.msra.mxu0 %v581
    %892 = vmatpush.msra.mxu0 %v577
    %893 = vmatpush.msra.mxu0 %v573
    %894 = vmatpush.msra.mxu0 %v569
    %895 = vmatpush.msra.mxu0 %v565
    %896 = vmatpush.msra.mxu0 %v561
    %897 = vmatmul.f32.gmra.mxu0 %v143
    %v898 = vpop.f32.mrf.mxu0
    %v899 = vadd.f32 %v867, %v898
    %900 = vmatmul.f32.gmra.mxu0 %v151
    %v901 = vpop.f32.mrf.mxu0
    %v902 = vadd.f32 %v870, %v901
    %903 = vmatmul.f32.gmra.mxu0 %v159
    %v904 = vpop.f32.mrf.mxu0
    %v905 = vadd.f32 %v873, %v904
    %906 = vmatmul.f32.gmra.mxu0 %v167
    %v907 = vpop.f32.mrf.mxu0
    %v908 = vadd.f32 %v876, %v907
    %909 = vmatmul.f32.gmra.mxu0 %v175
    %v910 = vpop.f32.mrf.mxu0
    %v911 = vadd.f32 %v879, %v910
    %912 = vdwg.mxu0
    %913 = vmatpush.msra.mxu0 %v685
    %914 = vmatpush.msra.mxu0 %v681
    %915 = vmatpush.msra.mxu0 %v677
    %916 = vmatpush.msra.mxu0 %v673
    %917 = vmatpush.msra.mxu0 %v669
    %918 = vmatpush.msra.mxu0 %v665
    %919 = vmatpush.msra.mxu0 %v661
    %920 = vmatpush.msra.mxu0 %v657
    %921 = vmatpush.msra.mxu0 %v653
    %922 = vmatpush.msra.mxu0 %v649
    %923 = vmatpush.msra.mxu0 %v645
    %924 = vmatpush.msra.mxu0 %v641
    %925 = vmatpush.msra.mxu0 %v637
    %926 = vmatpush.msra.mxu0 %v633
    %927 = vmatpush.msra.mxu0 %v629
    %928 = vmatpush.msra.mxu0 %v625
    %929 = vmatmul.f32.gmra.mxu0 %v144
    %v930 = vpop.f32.mrf.mxu0
    %v931 = vadd.f32 %v899, %v930
    %932 = vmatmul.f32.gmra.mxu0 %v152
    %v933 = vpop.f32.mrf.mxu0
    %v934 = vadd.f32 %v902, %v933
    %935 = vmatmul.f32.gmra.mxu0 %v160
    %v936 = vpop.f32.mrf.mxu0
    %v937 = vadd.f32 %v905, %v936
    %938 = vmatmul.f32.gmra.mxu0 %v168
    %v939 = vpop.f32.mrf.mxu0
    %v940 = vadd.f32 %v908, %v939
    %941 = vmatmul.f32.gmra.mxu0 %v176
    %v942 = vpop.f32.mrf.mxu0
    %v943 = vadd.f32 %v911, %v942
    %944 = vdwg.mxu0
    %945 = vmatpush.msra.mxu0 %v238
    %946 = vmatpush.msra.mxu0 %v234
    %947 = vmatpush.msra.mxu0 %v230
    %948 = vmatpush.msra.mxu0 %v226
    %949 = vmatpush.msra.mxu0 %v222
    %950 = vmatpush.msra.mxu0 %v218
    %951 = vmatpush.msra.mxu0 %v214
    %952 = vmatpush.msra.mxu0 %v210
    %953 = vmatpush.msra.mxu0 %v206
    %954 = vmatpush.msra.mxu0 %v202
    %955 = vmatpush.msra.mxu0 %v198
    %956 = vmatpush.msra.mxu0 %v194
    %957 = vmatpush.msra.mxu0 %v190
    %958 = vmatpush.msra.mxu0 %v186
    %959 = vmatpush.msra.mxu0 %v182
    %960 = vmatpush.msra.mxu0 %v178
    %961 = vmatmul.f32.gmra.mxu0 %v137
    %v962 = vpop.f32.mrf.mxu0
    %v963 = vadd.f32 0.0, %v962
    %964 = vmatmul.f32.gmra.mxu0 %v145
    %v965 = vpop.f32.mrf.mxu0
    %v966 = vadd.f32 0.0, %v965
    %967 = vmatmul.f32.gmra.mxu0 %v153
    %v968 = vpop.f32.mrf.mxu0
    %v969 = vadd.f32 0.0, %v968
    %970 = vmatmul.f32.gmra.mxu0 %v161
    %v971 = vpop.f32.mrf.mxu0
    %v972 = vadd.f32 0.0, %v971
    %973 = vmatmul.f32.gmra.mxu0 %v169
    %v974 = vpop.f32.mrf.mxu0
    %v975 = vadd.f32 0.0, %v974
    %976 = vdwg.mxu0
    %977 = vmatpush.msra.mxu0 %v302
    %978 = vmatpush.msra.mxu0 %v298
    %979 = vmatpush.msra.mxu0 %v294
    %980 = vmatpush.msra.mxu0 %v290
    %981 = vmatpush.msra.mxu0 %v286
    %982 = vmatpush.msra.mxu0 %v282
    %983 = vmatpush.msra.mxu0 %v278
    %984 = vmatpush.msra.mxu0 %v274
    %985 = vmatpush.msra.mxu0 %v270
    %986 = vmatpush.msra.mxu0 %v266
    %987 = vmatpush.msra.mxu0 %v262
    %988 = vmatpush.msra.mxu0 %v258
    %989 = vmatpush.msra.mxu0 %v254
    %990 = vmatpush.msra.mxu0 %v250
    %991 = vmatpush.msra.mxu0 %v246
    %992 = vmatpush.msra.mxu0 %v242
    %993 = vmatmul.f32.gmra.mxu0 %v138
    %v994 = vpop.f32.mrf.mxu0
    %v995 = vadd.f32 %v963, %v994
    %996 = vmatmul.f32.gmra.mxu0 %v146
    %v997 = vpop.f32.mrf.mxu0
    %v998 = vadd.f32 %v966, %v997
    %999 = vmatmul.f32.gmra.mxu0 %v154
    %v1000 = vpop.f32.mrf.mxu0
    %v1001 = vadd.f32 %v969, %v1000
    %1002 = vmatmul.f32.gmra.mxu0 %v162
    %v1003 = vpop.f32.mrf.mxu0
    %v1004 = vadd.f32 %v972, %v1003
    %1005 = vmatmul.f32.gmra.mxu0 %v170
    %v1006 = vpop.f32.mrf.mxu0
    %v1007 = vadd.f32 %v975, %v1006
    %1008 = vdwg.mxu0
    %1009 = vmatpush.msra.mxu0 %v366
    %1010 = vmatpush.msra.mxu0 %v362
    %1011 = vmatpush.msra.mxu0 %v358
    %1012 = vmatpush.msra.mxu0 %v354
    %1013 = vmatpush.msra.mxu0 %v350
    %1014 = vmatpush.msra.mxu0 %v346
    %1015 = vmatpush.msra.mxu0 %v342
    %1016 = vmatpush.msra.mxu0 %v338
    %1017 = vmatpush.msra.mxu0 %v334
    %1018 = vmatpush.msra.mxu0 %v330
    %1019 = vmatpush.msra.mxu0 %v326
    %1020 = vmatpush.msra.mxu0 %v322
    %1021 = vmatpush.msra.mxu0 %v318
    %1022 = vmatpush.msra.mxu0 %v314
    %1023 = vmatpush.msra.mxu0 %v310
    %1024 = vmatpush.msra.mxu0 %v306
    %1025 = vmatmul.f32.gmra.mxu0 %v139
    %v1026 = vpop.f32.mrf.mxu0
    %v1027 = vadd.f32 %v995, %v1026
    %1028 = vmatmul.f32.gmra.mxu0 %v147
    %v1029 = vpop.f32.mrf.mxu0
    %v1030 = vadd.f32 %v998, %v1029
    %1031 = vmatmul.f32.gmra.mxu0 %v155
    %v1032 = vpop.f32.mrf.mxu0
    %v1033 = vadd.f32 %v1001, %v1032
    %1034 = vmatmul.f32.gmra.mxu0 %v163
    %v1035 = vpop.f32.mrf.mxu0
    %v1036 = vadd.f32 %v1004, %v1035
    %1037 = vmatmul.f32.gmra.mxu0 %v171
    %v1038 = vpop.f32.mrf.mxu0
    %v1039 = vadd.f32 %v1007, %v1038
    %1040 = vdwg.mxu0
    %1041 = vmatpush.msra.mxu0 %v430
    %1042 = vmatpush.msra.mxu0 %v426
    %1043 = vmatpush.msra.mxu0 %v422
    %1044 = vmatpush.msra.mxu0 %v418
    %1045 = vmatpush.msra.mxu0 %v414
    %1046 = vmatpush.msra.mxu0 %v410
    %1047 = vmatpush.msra.mxu0 %v406
    %1048 = vmatpush.msra.mxu0 %v402
    %1049 = vmatpush.msra.mxu0 %v398
    %1050 = vmatpush.msra.mxu0 %v394
    %1051 = vmatpush.msra.mxu0 %v390
    %1052 = vmatpush.msra.mxu0 %v386
    %1053 = vmatpush.msra.mxu0 %v382
    %1054 = vmatpush.msra.mxu0 %v378
    %1055 = vmatpush.msra.mxu0 %v374
    %1056 = vmatpush.msra.mxu0 %v370
    %1057 = vmatmul.f32.gmra.mxu0 %v140
    %v1058 = vpop.f32.mrf.mxu0
    %v1059 = vadd.f32 %v1027, %v1058
    %1060 = vmatmul.f32.gmra.mxu0 %v148
    %v1061 = vpop.f32.mrf.mxu0
    %v1062 = vadd.f32 %v1030, %v1061
    %1063 = vmatmul.f32.gmra.mxu0 %v156
    %v1064 = vpop.f32.mrf.mxu0
    %v1065 = vadd.f32 %v1033, %v1064
    %1066 = vmatmul.f32.gmra.mxu0 %v164
    %v1067 = vpop.f32.mrf.mxu0
    %v1068 = vadd.f32 %v1036, %v1067
    %1069 = vmatmul.f32.gmra.mxu0 %v172
    %v1070 = vpop.f32.mrf.mxu0
    %v1071 = vadd.f32 %v1039, %v1070
    %1072 = vdwg.mxu0
    %1073 = vmatpush.msra.mxu0 %v494
    %1074 = vmatpush.msra.mxu0 %v490
    %1075 = vmatpush.msra.mxu0 %v486
    %1076 = vmatpush.msra.mxu0 %v482
    %1077 = vmatpush.msra.mxu0 %v478
    %1078 = vmatpush.msra.mxu0 %v474
    %1079 = vmatpush.msra.mxu0 %v470
    %1080 = vmatpush.msra.mxu0 %v466
    %1081 = vmatpush.msra.mxu0 %v462
    %1082 = vmatpush.msra.mxu0 %v458
    %1083 = vmatpush.msra.mxu0 %v454
    %1084 = vmatpush.msra.mxu0 %v450
    %1085 = vmatpush.msra.mxu0 %v446
    %1086 = vmatpush.msra.mxu0 %v442
    %1087 = vmatpush.msra.mxu0 %v438
    %1088 = vmatpush.msra.mxu0 %v434
    %1089 = vmatmul.f32.gmra.mxu0 %v141
    %v1090 = vpop.f32.mrf.mxu0
    %v1091 = vadd.f32 %v1059, %v1090
    %1092 = vmatmul.f32.gmra.mxu0 %v149
    %v1093 = vpop.f32.mrf.mxu0
    %v1094 = vadd.f32 %v1062, %v1093
    %1095 = vmatmul.f32.gmra.mxu0 %v157
    %v1096 = vpop.f32.mrf.mxu0
    %v1097 = vadd.f32 %v1065, %v1096
    %1098 = vmatmul.f32.gmra.mxu0 %v165
    %v1099 = vpop.f32.mrf.mxu0
    %v1100 = vadd.f32 %v1068, %v1099
    %1101 = vmatmul.f32.gmra.mxu0 %v173
    %v1102 = vpop.f32.mrf.mxu0
    %v1103 = vadd.f32 %v1071, %v1102
    %1104 = vdwg.mxu0
    %1105 = vmatpush.msra.mxu0 %v558
    %1106 = vmatpush.msra.mxu0 %v554
    %1107 = vmatpush.msra.mxu0 %v550
    %1108 = vmatpush.msra.mxu0 %v546
    %1109 = vmatpush.msra.mxu0 %v542
    %1110 = vmatpush.msra.mxu0 %v538
    %1111 = vmatpush.msra.mxu0 %v534
    %1112 = vmatpush.msra.mxu0 %v530
    %1113 = vmatpush.msra.mxu0 %v526
    %1114 = vmatpush.msra.mxu0 %v522
    %1115 = vmatpush.msra.mxu0 %v518
    %1116 = vmatpush.msra.mxu0 %v514
    %1117 = vmatpush.msra.mxu0 %v510
    %1118 = vmatpush.msra.mxu0 %v506
    %1119 = vmatpush.msra.mxu0 %v502
    %1120 = vmatpush.msra.mxu0 %v498
    %1121 = vmatmul.f32.gmra.mxu0 %v142
    %v1122 = vpop.f32.mrf.mxu0
    %v1123 = vadd.f32 %v1091, %v1122
    %1124 = vmatmul.f32.gmra.mxu0 %v150
    %v1125 = vpop.f32.mrf.mxu0
    %v1126 = vadd.f32 %v1094, %v1125
    %1127 = vmatmul.f32.gmra.mxu0 %v158
    %v1128 = vpop.f32.mrf.mxu0
    %v1129 = vadd.f32 %v1097, %v1128
    %1130 = vmatmul.f32.gmra.mxu0 %v166
    %v1131 = vpop.f32.mrf.mxu0
    %v1132 = vadd.f32 %v1100, %v1131
    %1133 = vmatmul.f32.gmra.mxu0 %v174
    %v1134 = vpop.f32.mrf.mxu0
    %v1135 = vadd.f32 %v1103, %v1134
    %1136 = vdwg.mxu0
    %1137 = vmatpush.msra.mxu0 %v622
    %1138 = vmatpush.msra.mxu0 %v618
    %1139 = vmatpush.msra.mxu0 %v614
    %1140 = vmatpush.msra.mxu0 %v610
    %1141 = vmatpush.msra.mxu0 %v606
    %1142 = vmatpush.msra.mxu0 %v602
    %1143 = vmatpush.msra.mxu0 %v598
    %1144 = vmatpush.msra.mxu0 %v594
    %1145 = vmatpush.msra.mxu0 %v590
    %1146 = vmatpush.msra.mxu0 %v586
    %1147 = vmatpush.msra.mxu0 %v582
    %1148 = vmatpush.msra.mxu0 %v578
    %1149 = vmatpush.msra.mxu0 %v574
    %1150 = vmatpush.msra.mxu0 %v570
    %1151 = vmatpush.msra.mxu0 %v566
    %1152 = vmatpush.msra.mxu0 %v562
    %1153 = vmatmul.f32.gmra.mxu0 %v143
    %v1154 = vpop.f32.mrf.mxu0
    %v1155 = vadd.f32 %v1123, %v1154
    %1156 = vmatmul.f32.gmra.mxu0 %v151
    %v1157 = vpop.f32.mrf.mxu0
    %v1158 = vadd.f32 %v1126, %v1157
    %1159 = vmatmul.f32.gmra.mxu0 %v159
    %v1160 = vpop.f32.mrf.mxu0
    %v1161 = vadd.f32 %v1129, %v1160
    %1162 = vmatmul.f32.gmra.mxu0 %v167
    %v1163 = vpop.f32.mrf.mxu0
    %v1164 = vadd.f32 %v1132, %v1163
    %1165 = vmatmul.f32.gmra.mxu0 %v175
    %v1166 = vpop.f32.mrf.mxu0
    %v1167 = vadd.f32 %v1135, %v1166
    %1168 = vdwg.mxu0
    %1169 = vmatpush.msra.mxu0 %v686
    %1170 = vmatpush.msra.mxu0 %v682
    %1171 = vmatpush.msra.mxu0 %v678
    %1172 = vmatpush.msra.mxu0 %v674
    %1173 = vmatpush.msra.mxu0 %v670
    %1174 = vmatpush.msra.mxu0 %v666
    %1175 = vmatpush.msra.mxu0 %v662
    %1176 = vmatpush.msra.mxu0 %v658
    %1177 = vmatpush.msra.mxu0 %v654
    %1178 = vmatpush.msra.mxu0 %v650
    %1179 = vmatpush.msra.mxu0 %v646
    %1180 = vmatpush.msra.mxu0 %v642
    %1181 = vmatpush.msra.mxu0 %v638
    %1182 = vmatpush.msra.mxu0 %v634
    %1183 = vmatpush.msra.mxu0 %v630
    %1184 = vmatpush.msra.mxu0 %v626
    %1185 = vmatmul.f32.gmra.mxu0 %v144
    %v1186 = vpop.f32.mrf.mxu0
    %v1187 = vadd.f32 %v1155, %v1186
    %1188 = vmatmul.f32.gmra.mxu0 %v152
    %v1189 = vpop.f32.mrf.mxu0
    %v1190 = vadd.f32 %v1158, %v1189
    %1191 = vmatmul.f32.gmra.mxu0 %v160
    %v1192 = vpop.f32.mrf.mxu0
    %v1193 = vadd.f32 %v1161, %v1192
    %1194 = vmatmul.f32.gmra.mxu0 %v168
    %v1195 = vpop.f32.mrf.mxu0
    %v1196 = vadd.f32 %v1164, %v1195
    %1197 = vmatmul.f32.gmra.mxu0 %v176
    %v1198 = vpop.f32.mrf.mxu0
    %v1199 = vadd.f32 %v1167, %v1198
    %1200 = vdwg.mxu0
    %1201 = vmatpush.msra.mxu0 %v239
    %1202 = vmatpush.msra.mxu0 %v235
    %1203 = vmatpush.msra.mxu0 %v231
    %1204 = vmatpush.msra.mxu0 %v227
    %1205 = vmatpush.msra.mxu0 %v223
    %1206 = vmatpush.msra.mxu0 %v219
    %1207 = vmatpush.msra.mxu0 %v215
    %1208 = vmatpush.msra.mxu0 %v211
    %1209 = vmatpush.msra.mxu0 %v207
    %1210 = vmatpush.msra.mxu0 %v203
    %1211 = vmatpush.msra.mxu0 %v199
    %1212 = vmatpush.msra.mxu0 %v195
    %1213 = vmatpush.msra.mxu0 %v191
    %1214 = vmatpush.msra.mxu0 %v187
    %1215 = vmatpush.msra.mxu0 %v183
    %1216 = vmatpush.msra.mxu0 %v179
    %1217 = vmatmul.f32.gmra.mxu0 %v137
    %v1218 = vpop.f32.mrf.mxu0
    %v1219 = vadd.f32 0.0, %v1218
    %1220 = vmatmul.f32.gmra.mxu0 %v145
    %v1221 = vpop.f32.mrf.mxu0
    %v1222 = vadd.f32 0.0, %v1221
    %1223 = vmatmul.f32.gmra.mxu0 %v153
    %v1224 = vpop.f32.mrf.mxu0
    %v1225 = vadd.f32 0.0, %v1224
    %1226 = vmatmul.f32.gmra.mxu0 %v161
    %v1227 = vpop.f32.mrf.mxu0
    %v1228 = vadd.f32 0.0, %v1227
    %1229 = vmatmul.f32.gmra.mxu0 %v169
    %v1230 = vpop.f32.mrf.mxu0
    %v1231 = vadd.f32 0.0, %v1230
    %1232 = vdwg.mxu0
    %1233 = vmatpush.msra.mxu0 %v303
    %1234 = vmatpush.msra.mxu0 %v299
    %1235 = vmatpush.msra.mxu0 %v295
    %1236 = vmatpush.msra.mxu0 %v291
    %1237 = vmatpush.msra.mxu0 %v287
    %1238 = vmatpush.msra.mxu0 %v283
    %1239 = vmatpush.msra.mxu0 %v279
    %1240 = vmatpush.msra.mxu0 %v275
    %1241 = vmatpush.msra.mxu0 %v271
    %1242 = vmatpush.msra.mxu0 %v267
    %1243 = vmatpush.msra.mxu0 %v263
    %1244 = vmatpush.msra.mxu0 %v259
    %1245 = vmatpush.msra.mxu0 %v255
    %1246 = vmatpush.msra.mxu0 %v251
    %1247 = vmatpush.msra.mxu0 %v247
    %1248 = vmatpush.msra.mxu0 %v243
    %1249 = vmatmul.f32.gmra.mxu0 %v138
    %v1250 = vpop.f32.mrf.mxu0
    %v1251 = vadd.f32 %v1219, %v1250
    %1252 = vmatmul.f32.gmra.mxu0 %v146
    %v1253 = vpop.f32.mrf.mxu0
    %v1254 = vadd.f32 %v1222, %v1253
    %1255 = vmatmul.f32.gmra.mxu0 %v154
    %v1256 = vpop.f32.mrf.mxu0
    %v1257 = vadd.f32 %v1225, %v1256
    %1258 = vmatmul.f32.gmra.mxu0 %v162
    %v1259 = vpop.f32.mrf.mxu0
    %v1260 = vadd.f32 %v1228, %v1259
    %1261 = vmatmul.f32.gmra.mxu0 %v170
    %v1262 = vpop.f32.mrf.mxu0
    %v1263 = vadd.f32 %v1231, %v1262
    %1264 = vdwg.mxu0
    %1265 = vmatpush.msra.mxu0 %v367
    %1266 = vmatpush.msra.mxu0 %v363
    %1267 = vmatpush.msra.mxu0 %v359
    %1268 = vmatpush.msra.mxu0 %v355
    %1269 = vmatpush.msra.mxu0 %v351
    %1270 = vmatpush.msra.mxu0 %v347
    %1271 = vmatpush.msra.mxu0 %v343
    %1272 = vmatpush.msra.mxu0 %v339
    %1273 = vmatpush.msra.mxu0 %v335
    %1274 = vmatpush.msra.mxu0 %v331
    %1275 = vmatpush.msra.mxu0 %v327
    %1276 = vmatpush.msra.mxu0 %v323
    %1277 = vmatpush.msra.mxu0 %v319
    %1278 = vmatpush.msra.mxu0 %v315
    %1279 = vmatpush.msra.mxu0 %v311
    %1280 = vmatpush.msra.mxu0 %v307
    %1281 = vmatmul.f32.gmra.mxu0 %v139
    %v1282 = vpop.f32.mrf.mxu0
    %v1283 = vadd.f32 %v1251, %v1282
    %1284 = vmatmul.f32.gmra.mxu0 %v147
    %v1285 = vpop.f32.mrf.mxu0
    %v1286 = vadd.f32 %v1254, %v1285
    %1287 = vmatmul.f32.gmra.mxu0 %v155
    %v1288 = vpop.f32.mrf.mxu0
    %v1289 = vadd.f32 %v1257, %v1288
    %1290 = vmatmul.f32.gmra.mxu0 %v163
    %v1291 = vpop.f32.mrf.mxu0
    %v1292 = vadd.f32 %v1260, %v1291
    %1293 = vmatmul.f32.gmra.mxu0 %v171
    %v1294 = vpop.f32.mrf.mxu0
    %v1295 = vadd.f32 %v1263, %v1294
    %1296 = vdwg.mxu0
    %1297 = vmatpush.msra.mxu0 %v431
    %1298 = vmatpush.msra.mxu0 %v427
    %1299 = vmatpush.msra.mxu0 %v423
    %1300 = vmatpush.msra.mxu0 %v419
    %1301 = vmatpush.msra.mxu0 %v415
    %1302 = vmatpush.msra.mxu0 %v411
    %1303 = vmatpush.msra.mxu0 %v407
    %1304 = vmatpush.msra.mxu0 %v403
    %1305 = vmatpush.msra.mxu0 %v399
    %1306 = vmatpush.msra.mxu0 %v395
    %1307 = vmatpush.msra.mxu0 %v391
    %1308 = vmatpush.msra.mxu0 %v387
    %1309 = vmatpush.msra.mxu0 %v383
    %1310 = vmatpush.msra.mxu0 %v379
    %1311 = vmatpush.msra.mxu0 %v375
    %1312 = vmatpush.msra.mxu0 %v371
    %1313 = vmatmul.f32.gmra.mxu0 %v140
    %v1314 = vpop.f32.mrf.mxu0
    %v1315 = vadd.f32 %v1283, %v1314
    %1316 = vmatmul.f32.gmra.mxu0 %v148
    %v1317 = vpop.f32.mrf.mxu0
    %v1318 = vadd.f32 %v1286, %v1317
    %1319 = vmatmul.f32.gmra.mxu0 %v156
    %v1320 = vpop.f32.mrf.mxu0
    %v1321 = vadd.f32 %v1289, %v1320
    %1322 = vmatmul.f32.gmra.mxu0 %v164
    %v1323 = vpop.f32.mrf.mxu0
    %v1324 = vadd.f32 %v1292, %v1323
    %1325 = vmatmul.f32.gmra.mxu0 %v172
    %v1326 = vpop.f32.mrf.mxu0
    %v1327 = vadd.f32 %v1295, %v1326
    %1328 = vdwg.mxu0
    %1329 = vmatpush.msra.mxu0 %v495
    %1330 = vmatpush.msra.mxu0 %v491
    %1331 = vmatpush.msra.mxu0 %v487
    %1332 = vmatpush.msra.mxu0 %v483
    %1333 = vmatpush.msra.mxu0 %v479
    %1334 = vmatpush.msra.mxu0 %v475
    %1335 = vmatpush.msra.mxu0 %v471
    %1336 = vmatpush.msra.mxu0 %v467
    %1337 = vmatpush.msra.mxu0 %v463
    %1338 = vmatpush.msra.mxu0 %v459
    %1339 = vmatpush.msra.mxu0 %v455
    %1340 = vmatpush.msra.mxu0 %v451
    %1341 = vmatpush.msra.mxu0 %v447
    %1342 = vmatpush.msra.mxu0 %v443
    %1343 = vmatpush.msra.mxu0 %v439
    %1344 = vmatpush.msra.mxu0 %v435
    %1345 = vmatmul.f32.gmra.mxu0 %v141
    %v1346 = vpop.f32.mrf.mxu0
    %v1347 = vadd.f32 %v1315, %v1346
    %1348 = vmatmul.f32.gmra.mxu0 %v149
    %v1349 = vpop.f32.mrf.mxu0
    %v1350 = vadd.f32 %v1318, %v1349
    %1351 = vmatmul.f32.gmra.mxu0 %v157
    %v1352 = vpop.f32.mrf.mxu0
    %v1353 = vadd.f32 %v1321, %v1352
    %1354 = vmatmul.f32.gmra.mxu0 %v165
    %v1355 = vpop.f32.mrf.mxu0
    %v1356 = vadd.f32 %v1324, %v1355
    %1357 = vmatmul.f32.gmra.mxu0 %v173
    %v1358 = vpop.f32.mrf.mxu0
    %v1359 = vadd.f32 %v1327, %v1358
    %1360 = vdwg.mxu0
    %1361 = vmatpush.msra.mxu0 %v559
    %1362 = vmatpush.msra.mxu0 %v555
    %1363 = vmatpush.msra.mxu0 %v551
    %1364 = vmatpush.msra.mxu0 %v547
    %1365 = vmatpush.msra.mxu0 %v543
    %1366 = vmatpush.msra.mxu0 %v539
    %1367 = vmatpush.msra.mxu0 %v535
    %1368 = vmatpush.msra.mxu0 %v531
    %1369 = vmatpush.msra.mxu0 %v527
    %1370 = vmatpush.msra.mxu0 %v523
    %1371 = vmatpush.msra.mxu0 %v519
    %1372 = vmatpush.msra.mxu0 %v515
    %1373 = vmatpush.msra.mxu0 %v511
    %1374 = vmatpush.msra.mxu0 %v507
    %1375 = vmatpush.msra.mxu0 %v503
    %1376 = vmatpush.msra.mxu0 %v499
    %1377 = vmatmul.f32.gmra.mxu0 %v142
    %v1378 = vpop.f32.mrf.mxu0
    %v1379 = vadd.f32 %v1347, %v1378
    %1380 = vmatmul.f32.gmra.mxu0 %v150
    %v1381 = vpop.f32.mrf.mxu0
    %v1382 = vadd.f32 %v1350, %v1381
    %1383 = vmatmul.f32.gmra.mxu0 %v158
    %v1384 = vpop.f32.mrf.mxu0
    %v1385 = vadd.f32 %v1353, %v1384
    %1386 = vmatmul.f32.gmra.mxu0 %v166
    %v1387 = vpop.f32.mrf.mxu0
    %v1388 = vadd.f32 %v1356, %v1387
    %1389 = vmatmul.f32.gmra.mxu0 %v174
    %v1390 = vpop.f32.mrf.mxu0
    %v1391 = vadd.f32 %v1359, %v1390
    %1392 = vdwg.mxu0
    %1393 = vmatpush.msra.mxu0 %v623
    %1394 = vmatpush.msra.mxu0 %v619
    %1395 = vmatpush.msra.mxu0 %v615
    %1396 = vmatpush.msra.mxu0 %v611
    %1397 = vmatpush.msra.mxu0 %v607
    %1398 = vmatpush.msra.mxu0 %v603
    %1399 = vmatpush.msra.mxu0 %v599
    %1400 = vmatpush.msra.mxu0 %v595
    %1401 = vmatpush.msra.mxu0 %v591
    %1402 = vmatpush.msra.mxu0 %v587
    %1403 = vmatpush.msra.mxu0 %v583
    %1404 = vmatpush.msra.mxu0 %v579
    %1405 = vmatpush.msra.mxu0 %v575
    %1406 = vmatpush.msra.mxu0 %v571
    %1407 = vmatpush.msra.mxu0 %v567
    %1408 = vmatpush.msra.mxu0 %v563
    %1409 = vmatmul.f32.gmra.mxu0 %v143
    %v1410 = vpop.f32.mrf.mxu0
    %v1411 = vadd.f32 %v1379, %v1410
    %1412 = vmatmul.f32.gmra.mxu0 %v151
    %v1413 = vpop.f32.mrf.mxu0
    %v1414 = vadd.f32 %v1382, %v1413
    %1415 = vmatmul.f32.gmra.mxu0 %v159
    %v1416 = vpop.f32.mrf.mxu0
    %v1417 = vadd.f32 %v1385, %v1416
    %1418 = vmatmul.f32.gmra.mxu0 %v167
    %v1419 = vpop.f32.mrf.mxu0
    %v1420 = vadd.f32 %v1388, %v1419
    %1421 = vmatmul.f32.gmra.mxu0 %v175
    %v1422 = vpop.f32.mrf.mxu0
    %v1423 = vadd.f32 %v1391, %v1422
    %1424 = vdwg.mxu0
    %1425 = vmatpush.msra.mxu0 %v687
    %1426 = vmatpush.msra.mxu0 %v683
    %1427 = vmatpush.msra.mxu0 %v679
    %1428 = vmatpush.msra.mxu0 %v675
    %1429 = vmatpush.msra.mxu0 %v671
    %1430 = vmatpush.msra.mxu0 %v667
    %1431 = vmatpush.msra.mxu0 %v663
    %1432 = vmatpush.msra.mxu0 %v659
    %1433 = vmatpush.msra.mxu0 %v655
    %1434 = vmatpush.msra.mxu0 %v651
    %1435 = vmatpush.msra.mxu0 %v647
    %1436 = vmatpush.msra.mxu0 %v643
    %1437 = vmatpush.msra.mxu0 %v639
    %1438 = vmatpush.msra.mxu0 %v635
    %1439 = vmatpush.msra.mxu0 %v631
    %1440 = vmatpush.msra.mxu0 %v627
    %1441 = vmatmul.f32.gmra.mxu0 %v144
    %v1442 = vpop.f32.mrf.mxu0
    %v1443 = vadd.f32 %v1411, %v1442
    %1444 = vmatmul.f32.gmra.mxu0 %v152
    %v1445 = vpop.f32.mrf.mxu0
    %v1446 = vadd.f32 %v1414, %v1445
    %1447 = vmatmul.f32.gmra.mxu0 %v160
    %v1448 = vpop.f32.mrf.mxu0
    %v1449 = vadd.f32 %v1417, %v1448
    %1450 = vmatmul.f32.gmra.mxu0 %v168
    %v1451 = vpop.f32.mrf.mxu0
    %v1452 = vadd.f32 %v1420, %v1451
    %1453 = vmatmul.f32.gmra.mxu0 %v176
    %v1454 = vpop.f32.mrf.mxu0
    %v1455 = vadd.f32 %v1423, %v1454
    %1456 = vdwg.mxu0
    %1457 = vmatpush.msra.mxu0 %v240
    %1458 = vmatpush.msra.mxu0 %v236
    %1459 = vmatpush.msra.mxu0 %v232
    %1460 = vmatpush.msra.mxu0 %v228
    %1461 = vmatpush.msra.mxu0 %v224
    %1462 = vmatpush.msra.mxu0 %v220
    %1463 = vmatpush.msra.mxu0 %v216
    %1464 = vmatpush.msra.mxu0 %v212
    %1465 = vmatpush.msra.mxu0 %v208
    %1466 = vmatpush.msra.mxu0 %v204
    %1467 = vmatpush.msra.mxu0 %v200
    %1468 = vmatpush.msra.mxu0 %v196
    %1469 = vmatpush.msra.mxu0 %v192
    %1470 = vmatpush.msra.mxu0 %v188
    %1471 = vmatpush.msra.mxu0 %v184
    %1472 = vmatpush.msra.mxu0 %v180
    %1473 = vmatmul.f32.gmra.mxu0 %v137
    %v1474 = vpop.f32.mrf.mxu0
    %v1475 = vadd.f32 0.0, %v1474
    %1476 = vmatmul.f32.gmra.mxu0 %v145
    %v1477 = vpop.f32.mrf.mxu0
    %v1478 = vadd.f32 0.0, %v1477
    %1479 = vmatmul.f32.gmra.mxu0 %v153
    %v1480 = vpop.f32.mrf.mxu0
    %v1481 = vadd.f32 0.0, %v1480
    %1482 = vmatmul.f32.gmra.mxu0 %v161
    %v1483 = vpop.f32.mrf.mxu0
    %v1484 = vadd.f32 0.0, %v1483
    %1485 = vmatmul.f32.gmra.mxu0 %v169
    %v1486 = vpop.f32.mrf.mxu0
    %v1487 = vadd.f32 0.0, %v1486
    %1488 = vdwg.mxu0
    %1489 = vmatpush.msra.mxu0 %v304
    %1490 = vmatpush.msra.mxu0 %v300
    %1491 = vmatpush.msra.mxu0 %v296
    %1492 = vmatpush.msra.mxu0 %v292
    %1493 = vmatpush.msra.mxu0 %v288
    %1494 = vmatpush.msra.mxu0 %v284
    %1495 = vmatpush.msra.mxu0 %v280
    %1496 = vmatpush.msra.mxu0 %v276
    %1497 = vmatpush.msra.mxu0 %v272
    %1498 = vmatpush.msra.mxu0 %v268
    %1499 = vmatpush.msra.mxu0 %v264
    %1500 = vmatpush.msra.mxu0 %v260
    %1501 = vmatpush.msra.mxu0 %v256
    %1502 = vmatpush.msra.mxu0 %v252
    %1503 = vmatpush.msra.mxu0 %v248
    %1504 = vmatpush.msra.mxu0 %v244
    %1505 = vmatmul.f32.gmra.mxu0 %v138
    %v1506 = vpop.f32.mrf.mxu0
    %v1507 = vadd.f32 %v1475, %v1506
    %1508 = vmatmul.f32.gmra.mxu0 %v146
    %v1509 = vpop.f32.mrf.mxu0
    %v1510 = vadd.f32 %v1478, %v1509
    %1511 = vmatmul.f32.gmra.mxu0 %v154
    %v1512 = vpop.f32.mrf.mxu0
    %v1513 = vadd.f32 %v1481, %v1512
    %1514 = vmatmul.f32.gmra.mxu0 %v162
    %v1515 = vpop.f32.mrf.mxu0
    %v1516 = vadd.f32 %v1484, %v1515
    %1517 = vmatmul.f32.gmra.mxu0 %v170
    %v1518 = vpop.f32.mrf.mxu0
    %v1519 = vadd.f32 %v1487, %v1518
    %1520 = vdwg.mxu0
    %1521 = vmatpush.msra.mxu0 %v368
    %1522 = vmatpush.msra.mxu0 %v364
    %1523 = vmatpush.msra.mxu0 %v360
    %1524 = vmatpush.msra.mxu0 %v356
    %1525 = vmatpush.msra.mxu0 %v352
    %1526 = vmatpush.msra.mxu0 %v348
    %1527 = vmatpush.msra.mxu0 %v344
    %1528 = vmatpush.msra.mxu0 %v340
    %1529 = vmatpush.msra.mxu0 %v336
    %1530 = vmatpush.msra.mxu0 %v332
    %1531 = vmatpush.msra.mxu0 %v328
    %1532 = vmatpush.msra.mxu0 %v324
    %1533 = vmatpush.msra.mxu0 %v320
    %1534 = vmatpush.msra.mxu0 %v316
    %1535 = vmatpush.msra.mxu0 %v312
    %1536 = vmatpush.msra.mxu0 %v308
    %1537 = vmatmul.f32.gmra.mxu0 %v139
    %v1538 = vpop.f32.mrf.mxu0
    %v1539 = vadd.f32 %v1507, %v1538
    %1540 = vmatmul.f32.gmra.mxu0 %v147
    %v1541 = vpop.f32.mrf.mxu0
    %v1542 = vadd.f32 %v1510, %v1541
    %1543 = vmatmul.f32.gmra.mxu0 %v155
    %v1544 = vpop.f32.mrf.mxu0
    %v1545 = vadd.f32 %v1513, %v1544
    %1546 = vmatmul.f32.gmra.mxu0 %v163
    %v1547 = vpop.f32.mrf.mxu0
    %v1548 = vadd.f32 %v1516, %v1547
    %1549 = vmatmul.f32.gmra.mxu0 %v171
    %v1550 = vpop.f32.mrf.mxu0
    %v1551 = vadd.f32 %v1519, %v1550
    %1552 = vdwg.mxu0
    %1553 = vmatpush.msra.mxu0 %v432
    %1554 = vmatpush.msra.mxu0 %v428
    %1555 = vmatpush.msra.mxu0 %v424
    %1556 = vmatpush.msra.mxu0 %v420
    %1557 = vmatpush.msra.mxu0 %v416
    %1558 = vmatpush.msra.mxu0 %v412
    %1559 = vmatpush.msra.mxu0 %v408
    %1560 = vmatpush.msra.mxu0 %v404
    %1561 = vmatpush.msra.mxu0 %v400
    %1562 = vmatpush.msra.mxu0 %v396
    %1563 = vmatpush.msra.mxu0 %v392
    %1564 = vmatpush.msra.mxu0 %v388
    %1565 = vmatpush.msra.mxu0 %v384
    %1566 = vmatpush.msra.mxu0 %v380
    %1567 = vmatpush.msra.mxu0 %v376
    %1568 = vmatpush.msra.mxu0 %v372
    %1569 = vmatmul.f32.gmra.mxu0 %v140
    %v1570 = vpop.f32.mrf.mxu0
    %v1571 = vadd.f32 %v1539, %v1570
    %1572 = vmatmul.f32.gmra.mxu0 %v148
    %v1573 = vpop.f32.mrf.mxu0
    %v1574 = vadd.f32 %v1542, %v1573
    %1575 = vmatmul.f32.gmra.mxu0 %v156
    %v1576 = vpop.f32.mrf.mxu0
    %v1577 = vadd.f32 %v1545, %v1576
    %1578 = vmatmul.f32.gmra.mxu0 %v164
    %v1579 = vpop.f32.mrf.mxu0
    %v1580 = vadd.f32 %v1548, %v1579
    %1581 = vmatmul.f32.gmra.mxu0 %v172
    %v1582 = vpop.f32.mrf.mxu0
    %v1583 = vadd.f32 %v1551, %v1582
    %1584 = vdwg.mxu0
    %1585 = vmatpush.msra.mxu0 %v496
    %1586 = vmatpush.msra.mxu0 %v492
    %1587 = vmatpush.msra.mxu0 %v488
    %1588 = vmatpush.msra.mxu0 %v484
    %1589 = vmatpush.msra.mxu0 %v480
    %1590 = vmatpush.msra.mxu0 %v476
    %1591 = vmatpush.msra.mxu0 %v472
    %1592 = vmatpush.msra.mxu0 %v468
    %1593 = vmatpush.msra.mxu0 %v464
    %1594 = vmatpush.msra.mxu0 %v460
    %1595 = vmatpush.msra.mxu0 %v456
    %1596 = vmatpush.msra.mxu0 %v452
    %1597 = vmatpush.msra.mxu0 %v448
    %1598 = vmatpush.msra.mxu0 %v444
    %1599 = vmatpush.msra.mxu0 %v440
    %1600 = vmatpush.msra.mxu0 %v436
    %1601 = vmatmul.f32.gmra.mxu0 %v141
    %v1602 = vpop.f32.mrf.mxu0
    %v1603 = vadd.f32 %v1571, %v1602
    %1604 = vmatmul.f32.gmra.mxu0 %v149
    %v1605 = vpop.f32.mrf.mxu0
    %v1606 = vadd.f32 %v1574, %v1605
    %1607 = vmatmul.f32.gmra.mxu0 %v157
    %v1608 = vpop.f32.mrf.mxu0
    %v1609 = vadd.f32 %v1577, %v1608
    %1610 = vmatmul.f32.gmra.mxu0 %v165
    %v1611 = vpop.f32.mrf.mxu0
    %v1612 = vadd.f32 %v1580, %v1611
    %1613 = vmatmul.f32.gmra.mxu0 %v173
    %v1614 = vpop.f32.mrf.mxu0
    %v1615 = vadd.f32 %v1583, %v1614
    %1616 = vdwg.mxu0
    %1617 = vmatpush.msra.mxu0 %v560
    %1618 = vmatpush.msra.mxu0 %v556
    %1619 = vmatpush.msra.mxu0 %v552
    %1620 = vmatpush.msra.mxu0 %v548
    %1621 = vmatpush.msra.mxu0 %v544
    %1622 = vmatpush.msra.mxu0 %v540
    %1623 = vmatpush.msra.mxu0 %v536
    %1624 = vmatpush.msra.mxu0 %v532
    %1625 = vmatpush.msra.mxu0 %v528
    %1626 = vmatpush.msra.mxu0 %v524
    %1627 = vmatpush.msra.mxu0 %v520
    %1628 = vmatpush.msra.mxu0 %v516
    %1629 = vmatpush.msra.mxu0 %v512
    %1630 = vmatpush.msra.mxu0 %v508
    %1631 = vmatpush.msra.mxu0 %v504
    %1632 = vmatpush.msra.mxu0 %v500
    %1633 = vmatmul.f32.gmra.mxu0 %v142
    %v1634 = vpop.f32.mrf.mxu0
    %v1635 = vadd.f32 %v1603, %v1634
    %1636 = vmatmul.f32.gmra.mxu0 %v150
    %v1637 = vpop.f32.mrf.mxu0
    %v1638 = vadd.f32 %v1606, %v1637
    %1639 = vmatmul.f32.gmra.mxu0 %v158
    %v1640 = vpop.f32.mrf.mxu0
    %v1641 = vadd.f32 %v1609, %v1640
    %1642 = vmatmul.f32.gmra.mxu0 %v166
    %v1643 = vpop.f32.mrf.mxu0
    %v1644 = vadd.f32 %v1612, %v1643
    %1645 = vmatmul.f32.gmra.mxu0 %v174
    %v1646 = vpop.f32.mrf.mxu0
    %v1647 = vadd.f32 %v1615, %v1646
    %1648 = vdwg.mxu0
    %1649 = vmatpush.msra.mxu0 %v624
    %1650 = vmatpush.msra.mxu0 %v620
    %1651 = vmatpush.msra.mxu0 %v616
    %1652 = vmatpush.msra.mxu0 %v612
    %1653 = vmatpush.msra.mxu0 %v608
    %1654 = vmatpush.msra.mxu0 %v604
    %1655 = vmatpush.msra.mxu0 %v600
    %1656 = vmatpush.msra.mxu0 %v596
    %1657 = vmatpush.msra.mxu0 %v592
    %1658 = vmatpush.msra.mxu0 %v588
    %1659 = vmatpush.msra.mxu0 %v584
    %1660 = vmatpush.msra.mxu0 %v580
    %1661 = vmatpush.msra.mxu0 %v576
    %1662 = vmatpush.msra.mxu0 %v572
    %1663 = vmatpush.msra.mxu0 %v568
    %1664 = vmatpush.msra.mxu0 %v564
    %1665 = vmatmul.f32.gmra.mxu0 %v143
    %v1666 = vpop.f32.mrf.mxu0
    %v1667 = vadd.f32 %v1635, %v1666
    %1668 = vmatmul.f32.gmra.mxu0 %v151
    %v1669 = vpop.f32.mrf.mxu0
    %v1670 = vadd.f32 %v1638, %v1669
    %1671 = vmatmul.f32.gmra.mxu0 %v159
    %v1672 = vpop.f32.mrf.mxu0
    %v1673 = vadd.f32 %v1641, %v1672
    %1674 = vmatmul.f32.gmra.mxu0 %v167
    %v1675 = vpop.f32.mrf.mxu0
    %v1676 = vadd.f32 %v1644, %v1675
    %1677 = vmatmul.f32.gmra.mxu0 %v175
    %v1678 = vpop.f32.mrf.mxu0
    %v1679 = vadd.f32 %v1647, %v1678
    %1680 = vdwg.mxu0
    %1681 = vmatpush.msra.mxu0 %v688
    %1682 = vmatpush.msra.mxu0 %v684
    %1683 = vmatpush.msra.mxu0 %v680
    %1684 = vmatpush.msra.mxu0 %v676
    %1685 = vmatpush.msra.mxu0 %v672
    %1686 = vmatpush.msra.mxu0 %v668
    %1687 = vmatpush.msra.mxu0 %v664
    %1688 = vmatpush.msra.mxu0 %v660
    %1689 = vmatpush.msra.mxu0 %v656
    %1690 = vmatpush.msra.mxu0 %v652
    %1691 = vmatpush.msra.mxu0 %v648
    %1692 = vmatpush.msra.mxu0 %v644
    %1693 = vmatpush.msra.mxu0 %v640
    %1694 = vmatpush.msra.mxu0 %v636
    %1695 = vmatpush.msra.mxu0 %v632
    %1696 = vmatpush.msra.mxu0 %v628
    %1697 = vmatmul.f32.gmra.mxu0 %v144
    %v1698 = vpop.f32.mrf.mxu0
    %v1699 = vadd.f32 %v1667, %v1698
    %1700 = vmatmul.f32.gmra.mxu0 %v152
    %v1701 = vpop.f32.mrf.mxu0
    %v1702 = vadd.f32 %v1670, %v1701
    %1703 = vmatmul.f32.gmra.mxu0 %v160
    %v1704 = vpop.f32.mrf.mxu0
    %v1705 = vadd.f32 %v1673, %v1704
    %1706 = vmatmul.f32.gmra.mxu0 %v168
    %v1707 = vpop.f32.mrf.mxu0
    %v1708 = vadd.f32 %v1676, %v1707
    %1709 = vmatmul.f32.gmra.mxu0 %v176
    %v1710 = vpop.f32.mrf.mxu0
    %v1711 = vadd.f32 %v1679, %v1710
    %1712 = vdwg.mxu0
    %v1713 = vmul.f32 %v931, %v931
    %v1714 = vmul.f32 %v1187, %v1187
    %v1715 = vmul.f32 %v1443, %v1443
    %v1716 = vmul.f32 %v1699, %v1699
    %v1717 = vmul.f32 %v934, %v934
    %v1718 = vmul.f32 %v1190, %v1190
    %v1719 = vmul.f32 %v1446, %v1446
    %v1720 = vmul.f32 %v1702, %v1702
    %v1721 = vmul.f32 %v931, %v934
    %v1722 = vmul.f32 %v1187, %v1190
    %v1723 = vmul.f32 %v1443, %v1446
    %v1724 = vmul.f32 %v1699, %v1702
    %v1725 = vsub.f32 %v937, %v1713
    %v1726 = vsub.f32 %v1193, %v1714
    %v1727 = vsub.f32 %v1449, %v1715
    %v1728 = vsub.f32 %v1705, %v1716
    %v1729 = vsub.f32 %v940, %v1717
    %v1730 = vsub.f32 %v1196, %v1718
    %v1731 = vsub.f32 %v1452, %v1719
    %v1732 = vsub.f32 %v1708, %v1720
    %v1733 = vsub.f32 %v943, %v1721
    %v1734 = vsub.f32 %v1199, %v1722
    %v1735 = vsub.f32 %v1455, %v1723
    %v1736 = vsub.f32 %v1711, %v1724
    %v1737 = vmul.f32 %v1721, 2.0
    %v1738 = vmul.f32 %v1722, 2.0
    %v1739 = vmul.f32 %v1723, 2.0
    %v1740 = vmul.f32 %v1724, 2.0
    %v1741 = vadd.f32 %v1737, 0.0001
    %v1742 = vadd.f32 %v1738, 0.0001
    %v1743 = vadd.f32 %v1739, 0.0001
    %v1744 = vadd.f32 %v1740, 0.0001
    %v1745 = vmul.f32 %v1733, 2.0
    %v1746 = vmul.f32 %v1734, 2.0
    %v1747 = vmul.f32 %v1735, 2.0
    %v1748 = vmul.f32 %v1736, 2.0
    %v1749 = vadd.f32 %v1745, 0.0009
    %v1750 = vadd.f32 %v1746, 0.0009
    %v1751 = vadd.f32 %v1747, 0.0009
    %v1752 = vadd.f32 %v1748, 0.0009
    %v1753 = vmul.f32 %v1741, %v1749
    %v1754 = vmul.f32 %v1742, %v1750
    %v1755 = vmul.f32 %v1743, %v1751
    %v1756 = vmul.f32 %v1744, %v1752
    %v1757 = vadd.f32 %v1713, %v1717
    %v1758 = vadd.f32 %v1714, %v1718
    %v1759 = vadd.f32 %v1715, %v1719
    %v1760 = vadd.f32 %v1716, %v1720
    %v1761 = vadd.f32 %v1757, 0.0001
    %v1762 = vadd.f32 %v1758, 0.0001
    %v1763 = vadd.f32 %v1759, 0.0001
    %v1764 = vadd.f32 %v1760, 0.0001
    %v1765 = vadd.f32 %v1725, %v1729
    %v1766 = vadd.f32 %v1726, %v1730
    %v1767 = vadd.f32 %v1727, %v1731
    %v1768 = vadd.f32 %v1728, %v1732
    %v1769 = vadd.f32 %v1765, 0.0009
    %v1770 = vadd.f32 %v1766, 0.0009
    %v1771 = vadd.f32 %v1767, 0.0009
    %v1772 = vadd.f32 %v1768, 0.0009
    %v1773 = vmul.f32 %v1761, %v1769
    %v1774 = vmul.f32 %v1762, %v1770
    %v1775 = vmul.f32 %v1763, %v1771
    %v1776 = vmul.f32 %v1764, %v1772
    %v1777 = vrcp.pop %v1773
    %v1778 = vmul.f32 %v1773, %v1777
    %v1779 = vsub.f32 1.0, %v1778
    %v1780 = vmul.f32 %v1777, %v1779
    %v1781 = vadd.f32 %v1777, %v1780
    %vm1782 = vweird.f32 %v1773
    %vm1783 = vweird.f32 %v1777
    %vm1784 = vmor %vm1782, %vm1783
    %v1785 = vsel %vm1784, %v1777, %v1781
    %v1786 = vand.u32 2147483647, %v1773
    %vm1787 = vcmp.eq.f32.partialorder %v1786, 8.507059e+37
    %v1788 = vand.u32 %v1773, 2147483648
    %v1789 = vor.u32 1.1754944e-38, %v1788
    %v1790 = vsel %vm1787, %v1789, %v1785
    %v1791 = vmul.f32 %v1753, %v1790
    %v1792 = vrcp.pop %v1774
    %v1793 = vmul.f32 %v1774, %v1792
    %v1794 = vsub.f32 1.0, %v1793
    %v1795 = vmul.f32 %v1792, %v1794
    %v1796 = vadd.f32 %v1792, %v1795
    %vm1797 = vweird.f32 %v1774
    %vm1798 = vweird.f32 %v1792
    %vm1799 = vmor %vm1797, %vm1798
    %v1800 = vsel %vm1799, %v1792, %v1796
    %v1801 = vand.u32 2147483647, %v1774
    %vm1802 = vcmp.eq.f32.partialorder %v1801, 8.507059e+37
    %v1803 = vand.u32 %v1774, 2147483648
    %v1804 = vor.u32 1.1754944e-38, %v1803
    %v1805 = vsel %vm1802, %v1804, %v1800
    %v1806 = vmul.f32 %v1754, %v1805
    %v1807 = vrcp.pop %v1775
    %v1808 = vmul.f32 %v1775, %v1807
    %v1809 = vsub.f32 1.0, %v1808
    %v1810 = vmul.f32 %v1807, %v1809
    %v1811 = vadd.f32 %v1807, %v1810
    %vm1812 = vweird.f32 %v1775
    %vm1813 = vweird.f32 %v1807
    %vm1814 = vmor %vm1812, %vm1813
    %v1815 = vsel %vm1814, %v1807, %v1811
    %v1816 = vand.u32 2147483647, %v1775
    %vm1817 = vcmp.eq.f32.partialorder %v1816, 8.507059e+37
    %v1818 = vand.u32 %v1775, 2147483648
    %v1819 = vor.u32 1.1754944e-38, %v1818
    %v1820 = vsel %vm1817, %v1819, %v1815
    %v1821 = vmul.f32 %v1755, %v1820
    %v1822 = vrcp.pop %v1776
    %v1823 = vmul.f32 %v1776, %v1822
    %v1824 = vsub.f32 1.0, %v1823
    %v1825 = vmul.f32 %v1822, %v1824
    %v1826 = vadd.f32 %v1822, %v1825
    %vm1827 = vweird.f32 %v1776
    %vm1828 = vweird.f32 %v1822
    %vm1829 = vmor %vm1827, %vm1828
    %v1830 = vsel %vm1829, %v1822, %v1826
    %v1831 = vand.u32 2147483647, %v1776
    %vm1832 = vcmp.eq.f32.partialorder %v1831, 8.507059e+37
    %v1833 = vand.u32 %v1776, 2147483648
    %v1834 = vor.u32 1.1754944e-38, %v1833
    %v1835 = vsel %vm1832, %v1834, %v1830
    %v1836 = vmul.f32 %v1756, %v1835
    %v1837 = vadd.f32 %v1791, %v1806
    %v1838 = vadd.f32 %v1837, %v1821
    %v1839 = vadd.f32 %v1838, %v1836
    %1840 = vadd.xlane.f32.xlu0 %v1839
    %v1841 = vpop.xlane.xlu0 %1840
    %vm1842 = vcmask 7168
    %1843 = vst.msk [vmem:[%s3] sm:$0xff] %vm1842, %v1841
    // Predicated region
    $region26: #{tpu_custom_call.1} parent=1 // pred_check
      _
    $region27: #{tpu_custom_call.1} parent=1 // pred_check_branch
      %1845 = sbr.rel (0) target = $region29
    $region28: #{tpu_custom_call.1} parent=1 // pred_region
      _
    $region29: #{tpu_custom_call.1} parent=1 // pred_fallthru
      _
    // Predicated region
    $region30: #{tpu_custom_call.1} parent=1 // pred_check
      _
    $region31: #{tpu_custom_call.1} parent=1 // pred_check_branch
      %1847 = sbr.rel (0) target = $region33
    $region32: #{tpu_custom_call.1} parent=1 // pred_region
      _
    $region33: #{tpu_custom_call.1} parent=1 // pred_fallthru
      _
    %1848 = vsyncpa [#allocation4], 1
    %1849 = vsyncpa [#allocation6], 1

</llo_original>
